<compile_context>
chip_gen: v5e
topology: v5e:2x2
jax: 0.10.0
libtpu: 0.0.40
codegen_flags: <defaults>
</compile_context>

<pallas_src>
import functools

import numpy as np
import jax
import jax.numpy as jnp
from jax import lax
from jax.experimental import pallas as pl
from jax.experimental.pallas import tpu as pltpu

# ----------------------------- small config ---------------------------------
GGC_OUT = 16      # gated_graph_conv_args['out_channels']
GGC_LAYERS = 2    # gated_graph_conv_args['num_layers']
EMB = 8           # emb_size == data.x feature dim
CIN = 4           # conv1d_1['in_channels'] == nodes per graph
B = 2             # number of graphs in the batch
N = B * CIN       # total number of nodes

CONV1 = dict(in_channels=CIN, out_channels=8, kernel_size=3, padding=1)
CONV2 = dict(in_channels=8, out_channels=4, kernel_size=1, padding=1)
MP1 = dict(kernel_size=3, stride=2)
MP2 = dict(kernel_size=2, stride=2)


def get_conv_mp_out_size(in_size, last_layer, mps):
    # verbatim from the PyTorch module
    size = in_size
    for mp in mps:
        size = round((size - mp['kernel_size']) / mp['stride'] + 1)
    size = size + 1 if size % 2 != 0 else size
    return int(size * last_layer['out_channels'])


# ---- segment geometry for the lane-batched conv pipeline --------------------
# 4 lane segments: [Z graph0, Z graph1, Y graph0, Y graph1].
SEG_L0 = [GGC_OUT + EMB] * B + [GGC_OUT] * B              # [24, 24, 16, 16]
PAD1 = CONV1['padding']
PAD2 = CONV2['padding']

A_START = np.cumsum([0] + [l + 2 * PAD1 for l in SEG_L0])[:-1].tolist()
LTOT1 = int(sum(l + 2 * PAD1 for l in SEG_L0))            # 88
LC1 = LTOT1 - CONV1['kernel_size'] + 1                    # 86
LM1 = LC1 - MP1['kernel_size'] + 1                        # 84
POOL1 = [(l - MP1['kernel_size']) // MP1['stride'] + 1 for l in SEG_L0]  # 11,11,7,7

B_START = np.cumsum([0] + [p + 2 * PAD2 for p in POOL1])[:-1].tolist()
LTOT2 = int(sum(p + 2 * PAD2 for p in POOL1))             # 44
LC2TOT = LTOT2 - CONV2['kernel_size'] + 1                 # 44
LM2 = LC2TOT - MP2['kernel_size'] + 1                     # 43
LC2 = [p + 2 * PAD2 - CONV2['kernel_size'] + 1 for p in POOL1]           # 13,13,9,9
POOL2 = [(l - MP2['kernel_size']) // MP2['stride'] + 1 for l in LC2]     # 6,6,4,4

O_START = np.cumsum([0] + POOL2)[:-1].tolist()            # [0, 6, 12, 16]
LTOT3 = int(sum(POOL2))                                   # 20

LZ4 = POOL2[0]                 # length after second pool, Z branch (6)
LY4 = POOL2[B]                 # length after second pool, Y branch (4)
Z_OFF = O_START[:B]            # [0, 6]
Y_OFF = O_START[B:]            # [12, 16]
FZ = CONV2['out_channels'] * LZ4
FY = CONV2['out_channels'] * LY4

# the module computes the Linear sizes with get_conv_mp_out_size; they must
# agree with the real flattened sizes for the forward pass to be well formed.
assert FZ == get_conv_mp_out_size(GGC_OUT + EMB, CONV2, [MP1, MP2])
assert FY == get_conv_mp_out_size(GGC_OUT, CONV2, [MP1, MP2])


def _build_pool_select():
    """Constant 0/1 selection matrices implementing both segmented MaxPool1d
    gathers (strided window starts per segment + conv2 zero padding)."""
    s1 = np.zeros((LM1, LTOT2), np.float32)
    for s in range(len(SEG_L0)):
        for j in range(POOL1[s]):
            s1[A_START[s] + j * MP1['stride'], B_START[s] + PAD2 + j] = 1.0
    s2 = np.zeros((LM2, LTOT3), np.float32)
    for s in range(len(SEG_L0)):
        for j in range(POOL2[s]):
            s2[B_START[s] + j * MP2['stride'], O_START[s] + j] = 1.0
    return jnp.asarray(s1), jnp.asarray(s2)


# ------------------------------- fused kernel --------------------------------
def net_kernel(x_ref, ei_ref, wcomb_ref, whh_ref, bih_ref, bhh_ref,
               w1_ref, b1_ref, w2_ref, b2_ref, s1_ref, s2_ref,
               f1w_ref, f1b_ref, f2w_ref, f2b_ref, out_ref):
    f32 = jnp.float32
    n_nodes, emb = x_ref.shape
    n_edges = ei_ref.shape[1]
    H = GGC_OUT

    x = x_ref[...]                                              # [N, EMB]

    # ----------------------------- GatedGraphConv ----------------------------
    # PyG zero-pads node features up to out_channels for the initial state.
    if emb < H:
        h = jnp.concatenate([x, jnp.zeros((n_nodes, H - emb), f32)], axis=1)
    else:
        h = x[:, :H]

    # Dense adjacency A[i, j] = #edges j -> i ("add" aggregation), built from
    # one-hot compares + a single MXU matmul (no XLA scatter).
    node_ids = lax.broadcasted_iota(jnp.int32, (n_nodes, n_edges), 0)
    src_oh = (node_ids == ei_ref[0:1, :]).astype(f32)           # [N, E]
    dst_oh = (node_ids == ei_ref[1:2, :]).astype(f32)           # [N, E]
    adj = lax.dot_general(dst_oh, src_oh,
                          dimension_numbers=(((1,), (1,)), ((), ())),
                          preferred_element_type=f32)           # [N, N]

    whh = [whh_ref[g] for g in range(3)]                        # 3 x [H, H]
    bih = [bih_ref[g] for g in range(3)]                        # 3 x [1, H]
    bhh = [bhh_ref[g] for g in range(3)]                        # 3 x [1, H]

    for l in range(GGC_LAYERS):                                 # unrolled
        ah = jnp.dot(adj, h, preferred_element_type=f32)        # A @ h
        # folded input projection: (A h) @ (W_l @ Wih_g^T) + b_ih_g
        gi = [jnp.dot(ah, wcomb_ref[3 * l + g], preferred_element_type=f32)
              + bih[g] for g in range(3)]
        gh = [jnp.dot(h, whh[g], preferred_element_type=f32)
              + bhh[g] for g in range(3)]
        r = jax.nn.sigmoid(gi[0] + gh[0])
        z = jax.nn.sigmoid(gi[1] + gh[1])
        n = jnp.tanh(gi[2] + r * gh[2])
        h = (1.0 - z) * n + z * h                               # [N, H]

    # ---------------- Conv head: 4 branches batched along lanes --------------
    zpad = jnp.zeros((CIN, PAD1), f32)
    segs = []
    for g in range(B):                                          # Z = cat(h, x)
        hg = h[g * CIN:(g + 1) * CIN, :]
        xg = x[g * CIN:(g + 1) * CIN, :]
        segs.append(jnp.concatenate([zpad, hg, xg, zpad], axis=1))
    for g in range(B):                                          # Y = h
        hg = h[g * CIN:(g + 1) * CIN, :]
        segs.append(jnp.concatenate([zpad, hg, zpad], axis=1))
    x1 = jnp.concatenate(segs, axis=1)                          # [CIN, LTOT1]

    # conv1 (k=3; zero padding baked into the segment layout) + bias + relu
    acc1 = jnp.dot(w1_ref[0], x1[:, 0:LC1], preferred_element_type=f32)
    for t in range(1, CONV1['kernel_size']):
        acc1 = acc1 + jnp.dot(w1_ref[t], x1[:, t:t + LC1],
                              preferred_element_type=f32)
    c1 = jnp.maximum(acc1 + b1_ref[...], 0.0)                   # [8, LC1]

    # maxpool1: shifted-window max + segmented selection matmul (also lays
    # down conv2's zero padding as all-zero columns).
    m1 = c1[:, 0:LM1]
    for t in range(1, MP1['kernel_size']):
        m1 = jnp.maximum(m1, c1[:, t:t + LM1])
    y2 = jnp.dot(m1, s1_ref[...], preferred_element_type=f32)   # [8, LTOT2]

    # conv2 (k=1, padding=1; the pad columns of y2 are exact zeros)
    acc2 = jnp.dot(w2_ref[0], y2[:, 0:LC2TOT], preferred_element_type=f32)
    for t in range(1, CONV2['kernel_size']):
        acc2 = acc2 + jnp.dot(w2_ref[t], y2[:, t:t + LC2TOT],
                              preferred_element_type=f32)
    c2 = acc2 + b2_ref[...]                                     # [4, LC2TOT]

    # maxpool2
    m2 = c2[:, 0:LM2]
    for t in range(1, MP2['kernel_size']):
        m2 = jnp.maximum(m2, c2[:, t:t + LM2])
    feat = jnp.dot(m2, s2_ref[...], preferred_element_type=f32)  # [4, LTOT3]

    # fc1(flatten(Z)) * fc2(flatten(Y)) per graph; dropout is identity (eval).
    logits = []
    for g in range(B):
        zf = feat[:, Z_OFF[g]:Z_OFF[g] + LZ4]                   # [4, LZ4]
        yf = feat[:, Y_OFF[g]:Y_OFF[g] + LY4]                   # [4, LY4]
        rz = jnp.sum(zf * f1w_ref[...], keepdims=True) + f1b_ref[...]  # [1,1]
        ry = jnp.sum(yf * f2w_ref[...], keepdims=True) + f2b_ref[...]  # [1,1]
        logits.append(rz * ry)
    res = jnp.concatenate(logits, axis=0)                       # [B, 1]
    # softmax over dim=1 (a size-1 dim — faithful to the PyTorch module).
    e = jnp.exp(res - jnp.max(res, axis=1, keepdims=True))
    out_ref[...] = e / jnp.sum(e, axis=1, keepdims=True)


# ------------------------------- Net forward ---------------------------------
def net_forward(x, edge_index, params):
    vmem = pl.BlockSpec(memory_space=pltpu.MemorySpace.VMEM)
    return pl.pallas_call(
        net_kernel,
        out_shape=jax.ShapeDtypeStruct((B, 1), jnp.float32),
        in_specs=[vmem] * 16,
        out_specs=vmem,
    )(x, edge_index, params['wcomb'], params['whh'], params['bih'],
      params['bhh'], params['w1'], params['b1'], params['w2'], params['b2'],
      params['s1'], params['s2'], params['f1w'], params['f1b'],
      params['f2w'], params['f2b'])


# ------------------------------- parameters ----------------------------------
def init_params(key):
    H = GGC_OUT
    ks = jax.random.split(key, 13)

    def nrm(k, shape, scale=0.1):
        return (scale * jax.random.normal(k, shape)).astype(jnp.float32)

    # Raw module parameters: GGC per-layer weight + shared GRUCell
    # (gate order r, z, n; GRU weights stored transposed per gate for
    # right-multiplication inside the kernel).
    ggc_w = nrm(ks[0], (GGC_LAYERS, H, H))
    wih_t = nrm(ks[1], (3, H, H))
    whh_t = nrm(ks[2], (3, H, H))

    # One-time parameter folding: gi_g = (A h) @ (W_l @ Wih_g^T) + b_ih_g.
    wcomb = jnp.einsum('lij,gjk->lgik', ggc_w, wih_t).reshape(
        GGC_LAYERS * 3, H, H).astype(jnp.float32)

    s1, s2 = _build_pool_select()

    return dict(
        wcomb=wcomb,
        whh=whh_t,
        bih=nrm(ks[3], (3, 1, H)),
        bhh=nrm(ks[4], (3, 1, H)),
        # Conv1d weights stored as [K, Cout, Cin] (per-tap matmul layout).
        w1=nrm(ks[5], (CONV1['kernel_size'], CONV1['out_channels'],
                       CONV1['in_channels'])),
        b1=nrm(ks[6], (CONV1['out_channels'], 1)),
        w2=nrm(ks[7], (CONV2['kernel_size'], CONV2['out_channels'],
                       CONV2['in_channels'])),
        b2=nrm(ks[8], (CONV2['out_channels'], 1)),
        # fc weights kept as reshape of torch Linear weight [1, F] -> [Cout2, L]
        f1w=nrm(ks[9], (CONV2['out_channels'], LZ4)),
        f1b=nrm(ks[10], (1, 1)),
        f2w=nrm(ks[11], (CONV2['out_channels'], LY4)),
        f2b=nrm(ks[12], (1, 1)),
        # segmented max-pool selection matrices (constants)
        s1=s1, s2=s2,
    )


# ---------------------------------- main --------------------------------------
if __name__ == "__main__":
    key = jax.random.PRNGKey(0)
    kx, kp = jax.random.split(key)

    # data.x : node features, data.edge_index : [2, E] (src, dst)
    x = jax.random.normal(kx, (N, EMB), dtype=jnp.float32)
    edges = []
    for g in range(B):
        base = g * CIN
        for i in range(CIN):
            edges.append((base + i, base + (i + 1) % CIN))
            edges.append((base + (i + 2) % CIN, base + i))
    edge_index = jnp.array(edges, dtype=jnp.int32).T        # [2, 16]

    params = init_params(kp)

    fwd = jax.jit(functools.partial(net_forward, params=params))
    out = jax.block_until_ready(fwd(x, edge_index))

    assert out.shape == (B, 1), out.shape
    assert bool(jnp.all(jnp.isfinite(out)))
    # softmax over a size-1 dim -> every row sums to 1
    assert bool(jnp.allclose(jnp.sum(out, axis=1), 1.0, atol=1e-5))
    print("KERNEL_OK")
</pallas_src>

<mosaic_0001>
module attributes {stable_mosaic.version = 11 : i64} {
  func.func @net_kernel(%arg0: memref<8x8xf32, #tpu.memory_space<vmem>>, %arg1: memref<2x16xi32, #tpu.memory_space<vmem>>, %arg2: memref<6x16x16xf32, #tpu.memory_space<vmem>>, %arg3: memref<3x16x16xf32, #tpu.memory_space<vmem>>, %arg4: memref<3x1x16xf32, #tpu.memory_space<vmem>>, %arg5: memref<3x1x16xf32, #tpu.memory_space<vmem>>, %arg6: memref<3x8x4xf32, #tpu.memory_space<vmem>>, %arg7: memref<8x1xf32, #tpu.memory_space<vmem>>, %arg8: memref<1x4x8xf32, #tpu.memory_space<vmem>>, %arg9: memref<4x1xf32, #tpu.memory_space<vmem>>, %arg10: memref<84x44xf32, #tpu.memory_space<vmem>>, %arg11: memref<43x20xf32, #tpu.memory_space<vmem>>, %arg12: memref<4x6xf32, #tpu.memory_space<vmem>>, %arg13: memref<1x1xf32, #tpu.memory_space<vmem>>, %arg14: memref<4x4xf32, #tpu.memory_space<vmem>>, %arg15: memref<1x1xf32, #tpu.memory_space<vmem>>, %arg16: memref<2x1xf32, #tpu.memory_space<vmem>>) attributes {dimension_semantics = [], scalar_prefetch = 0 : i64, scratch_operands = 0 : i64, tpu.core_type = #tpu.core_type<tc>} {
    %c0 = arith.constant 0 : index
    %c0_0 = arith.constant 0 : index
    %0 = vector.load %arg0[%c0, %c0_0] : memref<8x8xf32, #tpu.memory_space<vmem>>, vector<8x8xf32>
    %cst = arith.constant 0.000000e+00 : f32
    %1 = vector.broadcast %cst : f32 to vector<8x8xf32>
    %2 = tpu.concatenate %0, %1 in 1 : vector<8x8xf32>, vector<8x8xf32> -> vector<8x16xf32>
    %3 = tpu.iota {dimensions = array<i32: 0>} : vector<8x16xi32>
    %c0_1 = arith.constant 0 : index
    %c0_2 = arith.constant 0 : index
    %4 = vector.load %arg1[%c0_1, %c0_2] : memref<2x16xi32, #tpu.memory_space<vmem>>, vector<1x16xi32>
    %5 = vector.broadcast %4 : vector<1x16xi32> to vector<8x16xi32>
    %6 = arith.cmpi eq, %3, %5 : vector<8x16xi32>
    %7 = arith.extui %6 : vector<8x16xi1> to vector<8x16xi32>
    %8 = arith.sitofp %7 : vector<8x16xi32> to vector<8x16xf32>
    %c1 = arith.constant 1 : index
    %c0_3 = arith.constant 0 : index
    %9 = vector.load %arg1[%c1, %c0_3] : memref<2x16xi32, #tpu.memory_space<vmem>>, vector<1x16xi32>
    %10 = vector.broadcast %9 : vector<1x16xi32> to vector<8x16xi32>
    %11 = arith.cmpi eq, %3, %10 : vector<8x16xi32>
    %12 = arith.extui %11 : vector<8x16xi1> to vector<8x16xi32>
    %13 = arith.sitofp %12 : vector<8x16xi32> to vector<8x16xf32>
    %cst_4 = arith.constant dense<0.000000e+00> : vector<8x8xf32>
    %14 = tpu.matmul %13, %8, %cst_4 {dimension_numbers = #tpu.dot_dimension_numbers<[1], [1], [0], [0], [0, 0, 1, 0], [], []>} : vector<8x16xf32>, vector<8x16xf32>, vector<8x8xf32> -> vector<8x8xf32>
    %c0_5 = arith.constant 0 : index
    %c0_6 = arith.constant 0 : index
    %c0_7 = arith.constant 0 : index
    %15 = vector.load %arg3[%c0_5, %c0_6, %c0_7] : memref<3x16x16xf32, #tpu.memory_space<vmem>>, vector<1x16x16xf32>
    %16 = vector.shape_cast %15 : vector<1x16x16xf32> to vector<16x16xf32>
    %c1_8 = arith.constant 1 : index
    %c0_9 = arith.constant 0 : index
    %c0_10 = arith.constant 0 : index
    %17 = vector.load %arg3[%c1_8, %c0_9, %c0_10] : memref<3x16x16xf32, #tpu.memory_space<vmem>>, vector<1x16x16xf32>
    %18 = vector.shape_cast %17 : vector<1x16x16xf32> to vector<16x16xf32>
    %c2 = arith.constant 2 : index
    %c0_11 = arith.constant 0 : index
    %c0_12 = arith.constant 0 : index
    %19 = vector.load %arg3[%c2, %c0_11, %c0_12] : memref<3x16x16xf32, #tpu.memory_space<vmem>>, vector<1x16x16xf32>
    %20 = vector.shape_cast %19 : vector<1x16x16xf32> to vector<16x16xf32>
    %c0_13 = arith.constant 0 : index
    %c0_14 = arith.constant 0 : index
    %c0_15 = arith.constant 0 : index
    %21 = vector.load %arg4[%c0_13, %c0_14, %c0_15] : memref<3x1x16xf32, #tpu.memory_space<vmem>>, vector<1x1x16xf32>
    %22 = vector.shape_cast %21 : vector<1x1x16xf32> to vector<1x16xf32>
    %c1_16 = arith.constant 1 : index
    %c0_17 = arith.constant 0 : index
    %c0_18 = arith.constant 0 : index
    %23 = vector.load %arg4[%c1_16, %c0_17, %c0_18] : memref<3x1x16xf32, #tpu.memory_space<vmem>>, vector<1x1x16xf32>
    %24 = vector.shape_cast %23 : vector<1x1x16xf32> to vector<1x16xf32>
    %c2_19 = arith.constant 2 : index
    %c0_20 = arith.constant 0 : index
    %c0_21 = arith.constant 0 : index
    %25 = vector.load %arg4[%c2_19, %c0_20, %c0_21] : memref<3x1x16xf32, #tpu.memory_space<vmem>>, vector<1x1x16xf32>
    %26 = vector.shape_cast %25 : vector<1x1x16xf32> to vector<1x16xf32>
    %c0_22 = arith.constant 0 : index
    %c0_23 = arith.constant 0 : index
    %c0_24 = arith.constant 0 : index
    %27 = vector.load %arg5[%c0_22, %c0_23, %c0_24] : memref<3x1x16xf32, #tpu.memory_space<vmem>>, vector<1x1x16xf32>
    %28 = vector.shape_cast %27 : vector<1x1x16xf32> to vector<1x16xf32>
    %c1_25 = arith.constant 1 : index
    %c0_26 = arith.constant 0 : index
    %c0_27 = arith.constant 0 : index
    %29 = vector.load %arg5[%c1_25, %c0_26, %c0_27] : memref<3x1x16xf32, #tpu.memory_space<vmem>>, vector<1x1x16xf32>
    %30 = vector.shape_cast %29 : vector<1x1x16xf32> to vector<1x16xf32>
    %c2_28 = arith.constant 2 : index
    %c0_29 = arith.constant 0 : index
    %c0_30 = arith.constant 0 : index
    %31 = vector.load %arg5[%c2_28, %c0_29, %c0_30] : memref<3x1x16xf32, #tpu.memory_space<vmem>>, vector<1x1x16xf32>
    %32 = vector.shape_cast %31 : vector<1x1x16xf32> to vector<1x16xf32>
    %cst_31 = arith.constant dense<0.000000e+00> : vector<8x16xf32>
    %33 = tpu.matmul %14, %2, %cst_31 {dimension_numbers = #tpu.dot_dimension_numbers<[1], [0], [0], [1], [0, 0, 1, 1], [], []>} : vector<8x8xf32>, vector<8x16xf32>, vector<8x16xf32> -> vector<8x16xf32>
    %c0_32 = arith.constant 0 : index
    %c0_33 = arith.constant 0 : index
    %c0_34 = arith.constant 0 : index
    %34 = vector.load %arg2[%c0_32, %c0_33, %c0_34] : memref<6x16x16xf32, #tpu.memory_space<vmem>>, vector<1x16x16xf32>
    %35 = vector.shape_cast %34 : vector<1x16x16xf32> to vector<16x16xf32>
    %cst_35 = arith.constant dense<0.000000e+00> : vector<8x16xf32>
    %36 = tpu.matmul %33, %35, %cst_35 {dimension_numbers = #tpu.dot_dimension_numbers<[1], [0], [0], [1], [0, 0, 1, 1], [], []>} : vector<8x16xf32>, vector<16x16xf32>, vector<8x16xf32> -> vector<8x16xf32>
    %37 = vector.broadcast %22 : vector<1x16xf32> to vector<8x16xf32>
    %38 = arith.addf %36, %37 : vector<8x16xf32>
    %c1_36 = arith.constant 1 : index
    %c0_37 = arith.constant 0 : index
    %c0_38 = arith.constant 0 : index
    %39 = vector.load %arg2[%c1_36, %c0_37, %c0_38] : memref<6x16x16xf32, #tpu.memory_space<vmem>>, vector<1x16x16xf32>
    %40 = vector.shape_cast %39 : vector<1x16x16xf32> to vector<16x16xf32>
    %cst_39 = arith.constant dense<0.000000e+00> : vector<8x16xf32>
    %41 = tpu.matmul %33, %40, %cst_39 {dimension_numbers = #tpu.dot_dimension_numbers<[1], [0], [0], [1], [0, 0, 1, 1], [], []>} : vector<8x16xf32>, vector<16x16xf32>, vector<8x16xf32> -> vector<8x16xf32>
    %42 = vector.broadcast %24 : vector<1x16xf32> to vector<8x16xf32>
    %43 = arith.addf %41, %42 : vector<8x16xf32>
    %c2_40 = arith.constant 2 : index
    %c0_41 = arith.constant 0 : index
    %c0_42 = arith.constant 0 : index
    %44 = vector.load %arg2[%c2_40, %c0_41, %c0_42] : memref<6x16x16xf32, #tpu.memory_space<vmem>>, vector<1x16x16xf32>
    %45 = vector.shape_cast %44 : vector<1x16x16xf32> to vector<16x16xf32>
    %cst_43 = arith.constant dense<0.000000e+00> : vector<8x16xf32>
    %46 = tpu.matmul %33, %45, %cst_43 {dimension_numbers = #tpu.dot_dimension_numbers<[1], [0], [0], [1], [0, 0, 1, 1], [], []>} : vector<8x16xf32>, vector<16x16xf32>, vector<8x16xf32> -> vector<8x16xf32>
    %47 = vector.broadcast %26 : vector<1x16xf32> to vector<8x16xf32>
    %48 = arith.addf %46, %47 : vector<8x16xf32>
    %cst_44 = arith.constant dense<0.000000e+00> : vector<8x16xf32>
    %49 = tpu.matmul %2, %16, %cst_44 {dimension_numbers = #tpu.dot_dimension_numbers<[1], [0], [0], [1], [0, 0, 1, 1], [], []>} : vector<8x16xf32>, vector<16x16xf32>, vector<8x16xf32> -> vector<8x16xf32>
    %50 = vector.broadcast %28 : vector<1x16xf32> to vector<8x16xf32>
    %51 = arith.addf %49, %50 : vector<8x16xf32>
    %cst_45 = arith.constant dense<0.000000e+00> : vector<8x16xf32>
    %52 = tpu.matmul %2, %18, %cst_45 {dimension_numbers = #tpu.dot_dimension_numbers<[1], [0], [0], [1], [0, 0, 1, 1], [], []>} : vector<8x16xf32>, vector<16x16xf32>, vector<8x16xf32> -> vector<8x16xf32>
    %53 = vector.broadcast %30 : vector<1x16xf32> to vector<8x16xf32>
    %54 = arith.addf %52, %53 : vector<8x16xf32>
    %cst_46 = arith.constant dense<0.000000e+00> : vector<8x16xf32>
    %55 = tpu.matmul %2, %20, %cst_46 {dimension_numbers = #tpu.dot_dimension_numbers<[1], [0], [0], [1], [0, 0, 1, 1], [], []>} : vector<8x16xf32>, vector<16x16xf32>, vector<8x16xf32> -> vector<8x16xf32>
    %56 = vector.broadcast %32 : vector<1x16xf32> to vector<8x16xf32>
    %57 = arith.addf %55, %56 : vector<8x16xf32>
    %58 = arith.addf %38, %51 : vector<8x16xf32>
    %59 = arith.negf %58 : vector<8x16xf32>
    %60 = math.exp %59 : vector<8x16xf32>
    %cst_47 = arith.constant 1.000000e+00 : f32
    %61 = vector.broadcast %cst_47 : f32 to vector<8x16xf32>
    %62 = arith.addf %61, %60 : vector<8x16xf32>
    %63 = arith.divf %61, %62 : vector<8x16xf32>
    %64 = arith.addf %43, %54 : vector<8x16xf32>
    %65 = arith.negf %64 : vector<8x16xf32>
    %66 = math.exp %65 : vector<8x16xf32>
    %cst_48 = arith.constant 1.000000e+00 : f32
    %67 = vector.broadcast %cst_48 : f32 to vector<8x16xf32>
    %68 = arith.addf %67, %66 : vector<8x16xf32>
    %69 = arith.divf %67, %68 : vector<8x16xf32>
    %70 = arith.mulf %63, %57 : vector<8x16xf32>
    %71 = arith.addf %48, %70 : vector<8x16xf32>
    %72 = math.tanh %71 : vector<8x16xf32>
    %cst_49 = arith.constant 1.000000e+00 : f32
    %73 = vector.broadcast %cst_49 : f32 to vector<8x16xf32>
    %74 = arith.subf %73, %69 : vector<8x16xf32>
    %75 = arith.mulf %74, %72 : vector<8x16xf32>
    %76 = arith.mulf %69, %2 : vector<8x16xf32>
    %77 = arith.addf %75, %76 : vector<8x16xf32>
    %cst_50 = arith.constant dense<0.000000e+00> : vector<8x16xf32>
    %78 = tpu.matmul %14, %77, %cst_50 {dimension_numbers = #tpu.dot_dimension_numbers<[1], [0], [0], [1], [0, 0, 1, 1], [], []>} : vector<8x8xf32>, vector<8x16xf32>, vector<8x16xf32> -> vector<8x16xf32>
    %c3 = arith.constant 3 : index
    %c0_51 = arith.constant 0 : index
    %c0_52 = arith.constant 0 : index
    %79 = vector.load %arg2[%c3, %c0_51, %c0_52] : memref<6x16x16xf32, #tpu.memory_space<vmem>>, vector<1x16x16xf32>
    %80 = vector.shape_cast %79 : vector<1x16x16xf32> to vector<16x16xf32>
    %cst_53 = arith.constant dense<0.000000e+00> : vector<8x16xf32>
    %81 = tpu.matmul %78, %80, %cst_53 {dimension_numbers = #tpu.dot_dimension_numbers<[1], [0], [0], [1], [0, 0, 1, 1], [], []>} : vector<8x16xf32>, vector<16x16xf32>, vector<8x16xf32> -> vector<8x16xf32>
    %82 = vector.broadcast %22 : vector<1x16xf32> to vector<8x16xf32>
    %83 = arith.addf %81, %82 : vector<8x16xf32>
    %c4 = arith.constant 4 : index
    %c0_54 = arith.constant 0 : index
    %c0_55 = arith.constant 0 : index
    %84 = vector.load %arg2[%c4, %c0_54, %c0_55] : memref<6x16x16xf32, #tpu.memory_space<vmem>>, vector<1x16x16xf32>
    %85 = vector.shape_cast %84 : vector<1x16x16xf32> to vector<16x16xf32>
    %cst_56 = arith.constant dense<0.000000e+00> : vector<8x16xf32>
    %86 = tpu.matmul %78, %85, %cst_56 {dimension_numbers = #tpu.dot_dimension_numbers<[1], [0], [0], [1], [0, 0, 1, 1], [], []>} : vector<8x16xf32>, vector<16x16xf32>, vector<8x16xf32> -> vector<8x16xf32>
    %87 = vector.broadcast %24 : vector<1x16xf32> to vector<8x16xf32>
    %88 = arith.addf %86, %87 : vector<8x16xf32>
    %c5 = arith.constant 5 : index
    %c0_57 = arith.constant 0 : index
    %c0_58 = arith.constant 0 : index
    %89 = vector.load %arg2[%c5, %c0_57, %c0_58] : memref<6x16x16xf32, #tpu.memory_space<vmem>>, vector<1x16x16xf32>
    %90 = vector.shape_cast %89 : vector<1x16x16xf32> to vector<16x16xf32>
    %cst_59 = arith.constant dense<0.000000e+00> : vector<8x16xf32>
    %91 = tpu.matmul %78, %90, %cst_59 {dimension_numbers = #tpu.dot_dimension_numbers<[1], [0], [0], [1], [0, 0, 1, 1], [], []>} : vector<8x16xf32>, vector<16x16xf32>, vector<8x16xf32> -> vector<8x16xf32>
    %92 = vector.broadcast %26 : vector<1x16xf32> to vector<8x16xf32>
    %93 = arith.addf %91, %92 : vector<8x16xf32>
    %cst_60 = arith.constant dense<0.000000e+00> : vector<8x16xf32>
    %94 = tpu.matmul %77, %16, %cst_60 {dimension_numbers = #tpu.dot_dimension_numbers<[1], [0], [0], [1], [0, 0, 1, 1], [], []>} : vector<8x16xf32>, vector<16x16xf32>, vector<8x16xf32> -> vector<8x16xf32>
    %95 = vector.broadcast %28 : vector<1x16xf32> to vector<8x16xf32>
    %96 = arith.addf %94, %95 : vector<8x16xf32>
    %cst_61 = arith.constant dense<0.000000e+00> : vector<8x16xf32>
    %97 = tpu.matmul %77, %18, %cst_61 {dimension_numbers = #tpu.dot_dimension_numbers<[1], [0], [0], [1], [0, 0, 1, 1], [], []>} : vector<8x16xf32>, vector<16x16xf32>, vector<8x16xf32> -> vector<8x16xf32>
    %98 = vector.broadcast %30 : vector<1x16xf32> to vector<8x16xf32>
    %99 = arith.addf %97, %98 : vector<8x16xf32>
    %cst_62 = arith.constant dense<0.000000e+00> : vector<8x16xf32>
    %100 = tpu.matmul %77, %20, %cst_62 {dimension_numbers = #tpu.dot_dimension_numbers<[1], [0], [0], [1], [0, 0, 1, 1], [], []>} : vector<8x16xf32>, vector<16x16xf32>, vector<8x16xf32> -> vector<8x16xf32>
    %101 = vector.broadcast %32 : vector<1x16xf32> to vector<8x16xf32>
    %102 = arith.addf %100, %101 : vector<8x16xf32>
    %103 = arith.addf %83, %96 : vector<8x16xf32>
    %104 = arith.negf %103 : vector<8x16xf32>
    %105 = math.exp %104 : vector<8x16xf32>
    %cst_63 = arith.constant 1.000000e+00 : f32
    %106 = vector.broadcast %cst_63 : f32 to vector<8x16xf32>
    %107 = arith.addf %106, %105 : vector<8x16xf32>
    %108 = arith.divf %106, %107 : vector<8x16xf32>
    %109 = arith.addf %88, %99 : vector<8x16xf32>
    %110 = arith.negf %109 : vector<8x16xf32>
    %111 = math.exp %110 : vector<8x16xf32>
    %cst_64 = arith.constant 1.000000e+00 : f32
    %112 = vector.broadcast %cst_64 : f32 to vector<8x16xf32>
    %113 = arith.addf %112, %111 : vector<8x16xf32>
    %114 = arith.divf %112, %113 : vector<8x16xf32>
    %115 = arith.mulf %108, %102 : vector<8x16xf32>
    %116 = arith.addf %93, %115 : vector<8x16xf32>
    %117 = math.tanh %116 : vector<8x16xf32>
    %cst_65 = arith.constant 1.000000e+00 : f32
    %118 = vector.broadcast %cst_65 : f32 to vector<8x16xf32>
    %119 = arith.subf %118, %114 : vector<8x16xf32>
    %120 = arith.mulf %119, %117 : vector<8x16xf32>
    %121 = arith.mulf %114, %77 : vector<8x16xf32>
    %122 = arith.addf %120, %121 : vector<8x16xf32>
    %cst_66 = arith.constant 0.000000e+00 : f32
    %123 = vector.broadcast %cst_66 : f32 to vector<4x1xf32>
    %124 = vector.extract_strided_slice %122 {offsets = [0, 0], sizes = [4, 16], strides = [1, 1]} : vector<8x16xf32> to vector<4x16xf32>
    %125 = vector.extract_strided_slice %0 {offsets = [0, 0], sizes = [4, 8], strides = [1, 1]} : vector<8x8xf32> to vector<4x8xf32>
    %126 = tpu.concatenate %123, %124, %125, %123 in 1 : vector<4x1xf32>, vector<4x16xf32>, vector<4x8xf32>, vector<4x1xf32> -> vector<4x26xf32>
    %127 = vector.extract_strided_slice %122 {offsets = [4, 0], sizes = [4, 16], strides = [1, 1]} : vector<8x16xf32> to vector<4x16xf32>
    %128 = vector.extract_strided_slice %0 {offsets = [4, 0], sizes = [4, 8], strides = [1, 1]} : vector<8x8xf32> to vector<4x8xf32>
    %129 = tpu.concatenate %123, %127, %128, %123 in 1 : vector<4x1xf32>, vector<4x16xf32>, vector<4x8xf32>, vector<4x1xf32> -> vector<4x26xf32>
    %130 = vector.extract_strided_slice %122 {offsets = [0, 0], sizes = [4, 16], strides = [1, 1]} : vector<8x16xf32> to vector<4x16xf32>
    %131 = tpu.concatenate %123, %130, %123 in 1 : vector<4x1xf32>, vector<4x16xf32>, vector<4x1xf32> -> vector<4x18xf32>
    %132 = vector.extract_strided_slice %122 {offsets = [4, 0], sizes = [4, 16], strides = [1, 1]} : vector<8x16xf32> to vector<4x16xf32>
    %133 = tpu.concatenate %123, %132, %123 in 1 : vector<4x1xf32>, vector<4x16xf32>, vector<4x1xf32> -> vector<4x18xf32>
    %134 = tpu.concatenate %126, %129, %131, %133 in 1 : vector<4x26xf32>, vector<4x26xf32>, vector<4x18xf32>, vector<4x18xf32> -> vector<4x88xf32>
    %c0_67 = arith.constant 0 : index
    %c0_68 = arith.constant 0 : index
    %c0_69 = arith.constant 0 : index
    %135 = vector.load %arg6[%c0_67, %c0_68, %c0_69] : memref<3x8x4xf32, #tpu.memory_space<vmem>>, vector<1x8x4xf32>
    %136 = vector.shape_cast %135 : vector<1x8x4xf32> to vector<8x4xf32>
    %137 = vector.extract_strided_slice %134 {offsets = [0, 0], sizes = [4, 86], strides = [1, 1]} : vector<4x88xf32> to vector<4x86xf32>
    %cst_70 = arith.constant dense<0.000000e+00> : vector<8x86xf32>
    %138 = tpu.matmul %136, %137, %cst_70 {dimension_numbers = #tpu.dot_dimension_numbers<[1], [0], [0], [1], [0, 0, 1, 1], [], []>} : vector<8x4xf32>, vector<4x86xf32>, vector<8x86xf32> -> vector<8x86xf32>
    %c1_71 = arith.constant 1 : index
    %c0_72 = arith.constant 0 : index
    %c0_73 = arith.constant 0 : index
    %139 = vector.load %arg6[%c1_71, %c0_72, %c0_73] : memref<3x8x4xf32, #tpu.memory_space<vmem>>, vector<1x8x4xf32>
    %140 = vector.shape_cast %139 : vector<1x8x4xf32> to vector<8x4xf32>
    %141 = vector.extract_strided_slice %134 {offsets = [0, 1], sizes = [4, 86], strides = [1, 1]} : vector<4x88xf32> to vector<4x86xf32>
    %cst_74 = arith.constant dense<0.000000e+00> : vector<8x86xf32>
    %142 = tpu.matmul %140, %141, %cst_74 {dimension_numbers = #tpu.dot_dimension_numbers<[1], [0], [0], [1], [0, 0, 1, 1], [], []>} : vector<8x4xf32>, vector<4x86xf32>, vector<8x86xf32> -> vector<8x86xf32>
    %143 = arith.addf %138, %142 : vector<8x86xf32>
    %c2_75 = arith.constant 2 : index
    %c0_76 = arith.constant 0 : index
    %c0_77 = arith.constant 0 : index
    %144 = vector.load %arg6[%c2_75, %c0_76, %c0_77] : memref<3x8x4xf32, #tpu.memory_space<vmem>>, vector<1x8x4xf32>
    %145 = vector.shape_cast %144 : vector<1x8x4xf32> to vector<8x4xf32>
    %146 = vector.extract_strided_slice %134 {offsets = [0, 2], sizes = [4, 86], strides = [1, 1]} : vector<4x88xf32> to vector<4x86xf32>
    %cst_78 = arith.constant dense<0.000000e+00> : vector<8x86xf32>
    %147 = tpu.matmul %145, %146, %cst_78 {dimension_numbers = #tpu.dot_dimension_numbers<[1], [0], [0], [1], [0, 0, 1, 1], [], []>} : vector<8x4xf32>, vector<4x86xf32>, vector<8x86xf32> -> vector<8x86xf32>
    %148 = arith.addf %143, %147 : vector<8x86xf32>
    %c0_79 = arith.constant 0 : index
    %c0_80 = arith.constant 0 : index
    %149 = vector.load %arg7[%c0_79, %c0_80] : memref<8x1xf32, #tpu.memory_space<vmem>>, vector<8x1xf32>
    %150 = vector.broadcast %149 : vector<8x1xf32> to vector<8x86xf32>
    %151 = arith.addf %148, %150 : vector<8x86xf32>
    %cst_81 = arith.constant 0.000000e+00 : f32
    %152 = vector.broadcast %cst_81 : f32 to vector<8x86xf32>
    %153 = arith.maximumf %151, %152 : vector<8x86xf32>
    %154 = vector.extract_strided_slice %153 {offsets = [0, 0], sizes = [8, 84], strides = [1, 1]} : vector<8x86xf32> to vector<8x84xf32>
    %155 = vector.extract_strided_slice %153 {offsets = [0, 1], sizes = [8, 84], strides = [1, 1]} : vector<8x86xf32> to vector<8x84xf32>
    %156 = arith.maximumf %154, %155 : vector<8x84xf32>
    %157 = vector.extract_strided_slice %153 {offsets = [0, 2], sizes = [8, 84], strides = [1, 1]} : vector<8x86xf32> to vector<8x84xf32>
    %158 = arith.maximumf %156, %157 : vector<8x84xf32>
    %c0_82 = arith.constant 0 : index
    %c0_83 = arith.constant 0 : index
    %159 = vector.load %arg10[%c0_82, %c0_83] : memref<84x44xf32, #tpu.memory_space<vmem>>, vector<84x44xf32>
    %cst_84 = arith.constant dense<0.000000e+00> : vector<8x44xf32>
    %160 = tpu.matmul %158, %159, %cst_84 {dimension_numbers = #tpu.dot_dimension_numbers<[1], [0], [0], [1], [0, 0, 1, 1], [], []>} : vector<8x84xf32>, vector<84x44xf32>, vector<8x44xf32> -> vector<8x44xf32>
    %c0_85 = arith.constant 0 : index
    %c0_86 = arith.constant 0 : index
    %c0_87 = arith.constant 0 : index
    %161 = vector.load %arg8[%c0_85, %c0_86, %c0_87] : memref<1x4x8xf32, #tpu.memory_space<vmem>>, vector<1x4x8xf32>
    %162 = vector.shape_cast %161 : vector<1x4x8xf32> to vector<4x8xf32>
    %cst_88 = arith.constant dense<0.000000e+00> : vector<4x44xf32>
    %163 = tpu.matmul %162, %160, %cst_88 {dimension_numbers = #tpu.dot_dimension_numbers<[1], [0], [0], [1], [0, 0, 1, 1], [], []>} : vector<4x8xf32>, vector<8x44xf32>, vector<4x44xf32> -> vector<4x44xf32>
    %c0_89 = arith.constant 0 : index
    %c0_90 = arith.constant 0 : index
    %164 = vector.load %arg9[%c0_89, %c0_90] : memref<4x1xf32, #tpu.memory_space<vmem>>, vector<4x1xf32>
    %165 = vector.broadcast %164 : vector<4x1xf32> to vector<4x44xf32>
    %166 = arith.addf %163, %165 : vector<4x44xf32>
    %167 = vector.extract_strided_slice %166 {offsets = [0, 0], sizes = [4, 43], strides = [1, 1]} : vector<4x44xf32> to vector<4x43xf32>
    %168 = vector.extract_strided_slice %166 {offsets = [0, 1], sizes = [4, 43], strides = [1, 1]} : vector<4x44xf32> to vector<4x43xf32>
    %169 = arith.maximumf %167, %168 : vector<4x43xf32>
    %c0_91 = arith.constant 0 : index
    %c0_92 = arith.constant 0 : index
    %170 = vector.load %arg11[%c0_91, %c0_92] : memref<43x20xf32, #tpu.memory_space<vmem>>, vector<43x20xf32>
    %cst_93 = arith.constant dense<0.000000e+00> : vector<4x20xf32>
    %171 = tpu.matmul %169, %170, %cst_93 {dimension_numbers = #tpu.dot_dimension_numbers<[1], [0], [0], [1], [0, 0, 1, 1], [], []>} : vector<4x43xf32>, vector<43x20xf32>, vector<4x20xf32> -> vector<4x20xf32>
    %172 = vector.extract_strided_slice %171 {offsets = [0, 0], sizes = [4, 6], strides = [1, 1]} : vector<4x20xf32> to vector<4x6xf32>
    %173 = vector.extract_strided_slice %171 {offsets = [0, 12], sizes = [4, 4], strides = [1, 1]} : vector<4x20xf32> to vector<4x4xf32>
    %c0_94 = arith.constant 0 : index
    %c0_95 = arith.constant 0 : index
    %174 = vector.load %arg12[%c0_94, %c0_95] : memref<4x6xf32, #tpu.memory_space<vmem>>, vector<4x6xf32>
    %175 = arith.mulf %172, %174 : vector<4x6xf32>
    %176 = vector.shape_cast %175 : vector<4x6xf32> to vector<1x4x6xf32>
    %cst_96 = arith.constant dense<0.000000e+00> : vector<1xf32>
    %177 = vector.multi_reduction <add>, %176, %cst_96 [1, 2] : vector<1x4x6xf32> to vector<1xf32>
    %178 = vector.shape_cast %177 : vector<1xf32> to vector<1x1x1xf32>
    %179 = vector.extract %178[0, 0, 0] : f32 from vector<1x1x1xf32>
    %180 = vector.broadcast %179 : f32 to vector<1x1xf32>
    %c0_97 = arith.constant 0 : index
    %c0_98 = arith.constant 0 : index
    %181 = vector.load %arg13[%c0_97, %c0_98] : memref<1x1xf32, #tpu.memory_space<vmem>>, vector<1x1xf32>
    %182 = arith.addf %180, %181 : vector<1x1xf32>
    %c0_99 = arith.constant 0 : index
    %c0_100 = arith.constant 0 : index
    %183 = vector.load %arg14[%c0_99, %c0_100] : memref<4x4xf32, #tpu.memory_space<vmem>>, vector<4x4xf32>
    %184 = arith.mulf %173, %183 : vector<4x4xf32>
    %185 = vector.shape_cast %184 : vector<4x4xf32> to vector<1x4x4xf32>
    %cst_101 = arith.constant dense<0.000000e+00> : vector<1xf32>
    %186 = vector.multi_reduction <add>, %185, %cst_101 [1, 2] : vector<1x4x4xf32> to vector<1xf32>
    %187 = vector.shape_cast %186 : vector<1xf32> to vector<1x1x1xf32>
    %188 = vector.extract %187[0, 0, 0] : f32 from vector<1x1x1xf32>
    %189 = vector.broadcast %188 : f32 to vector<1x1xf32>
    %c0_102 = arith.constant 0 : index
    %c0_103 = arith.constant 0 : index
    %190 = vector.load %arg15[%c0_102, %c0_103] : memref<1x1xf32, #tpu.memory_space<vmem>>, vector<1x1xf32>
    %191 = arith.addf %189, %190 : vector<1x1xf32>
    %192 = arith.mulf %182, %191 : vector<1x1xf32>
    %193 = vector.extract_strided_slice %171 {offsets = [0, 6], sizes = [4, 6], strides = [1, 1]} : vector<4x20xf32> to vector<4x6xf32>
    %194 = vector.extract_strided_slice %171 {offsets = [0, 16], sizes = [4, 4], strides = [1, 1]} : vector<4x20xf32> to vector<4x4xf32>
    %c0_104 = arith.constant 0 : index
    %c0_105 = arith.constant 0 : index
    %195 = vector.load %arg12[%c0_104, %c0_105] : memref<4x6xf32, #tpu.memory_space<vmem>>, vector<4x6xf32>
    %196 = arith.mulf %193, %195 : vector<4x6xf32>
    %197 = vector.shape_cast %196 : vector<4x6xf32> to vector<1x4x6xf32>
    %cst_106 = arith.constant dense<0.000000e+00> : vector<1xf32>
    %198 = vector.multi_reduction <add>, %197, %cst_106 [1, 2] : vector<1x4x6xf32> to vector<1xf32>
    %199 = vector.shape_cast %198 : vector<1xf32> to vector<1x1x1xf32>
    %200 = vector.extract %199[0, 0, 0] : f32 from vector<1x1x1xf32>
    %201 = vector.broadcast %200 : f32 to vector<1x1xf32>
    %c0_107 = arith.constant 0 : index
    %c0_108 = arith.constant 0 : index
    %202 = vector.load %arg13[%c0_107, %c0_108] : memref<1x1xf32, #tpu.memory_space<vmem>>, vector<1x1xf32>
    %203 = arith.addf %201, %202 : vector<1x1xf32>
    %c0_109 = arith.constant 0 : index
    %c0_110 = arith.constant 0 : index
    %204 = vector.load %arg14[%c0_109, %c0_110] : memref<4x4xf32, #tpu.memory_space<vmem>>, vector<4x4xf32>
    %205 = arith.mulf %194, %204 : vector<4x4xf32>
    %206 = vector.shape_cast %205 : vector<4x4xf32> to vector<1x4x4xf32>
    %cst_111 = arith.constant dense<0.000000e+00> : vector<1xf32>
    %207 = vector.multi_reduction <add>, %206, %cst_111 [1, 2] : vector<1x4x4xf32> to vector<1xf32>
    %208 = vector.shape_cast %207 : vector<1xf32> to vector<1x1x1xf32>
    %209 = vector.extract %208[0, 0, 0] : f32 from vector<1x1x1xf32>
    %210 = vector.broadcast %209 : f32 to vector<1x1xf32>
    %c0_112 = arith.constant 0 : index
    %c0_113 = arith.constant 0 : index
    %211 = vector.load %arg15[%c0_112, %c0_113] : memref<1x1xf32, #tpu.memory_space<vmem>>, vector<1x1xf32>
    %212 = arith.addf %210, %211 : vector<1x1xf32>
    %213 = arith.mulf %203, %212 : vector<1x1xf32>
    %214 = tpu.concatenate %192, %213 in 0 : vector<1x1xf32>, vector<1x1xf32> -> vector<2x1xf32>
    %cst_114 = arith.constant dense<0xFF800000> : vector<2xf32>
    %215 = vector.multi_reduction <maximumf>, %214, %cst_114 [1] : vector<2x1xf32> to vector<2xf32>
    %216 = vector.shape_cast %215 : vector<2xf32> to vector<2x1xf32>
    %217 = arith.subf %214, %216 : vector<2x1xf32>
    %218 = math.exp %217 : vector<2x1xf32>
    %cst_115 = arith.constant dense<0.000000e+00> : vector<2xf32>
    %219 = vector.multi_reduction <add>, %218, %cst_115 [1] : vector<2x1xf32> to vector<2xf32>
    %220 = vector.shape_cast %219 : vector<2xf32> to vector<2x1xf32>
    %221 = arith.divf %218, %220 : vector<2x1xf32>
    %c0_116 = arith.constant 0 : index
    %c0_117 = arith.constant 0 : index
    %222 = vector.load %arg16[%c0_116, %c0_117] : memref<2x1xf32, #tpu.memory_space<vmem>>, vector<2x1xf32>
    tpu.vector_store %arg16[%c0_116, %c0_117], %221 {strides = array<i32>} : memref<2x1xf32, #tpu.memory_space<vmem>>, vector<2x1xf32>,
    return
  }
}

</mosaic_0001>

<llo_original>
// kernel: net_forward.1
$region0: #{net_forward.1}
  #allocation0 [shape = 'u32[]', space=smem, size = 0x4, offset = 0x4, fixed_abs, tag = 'smem constant byte address 0x4 - core index']
  #allocation1 [shape = 'u32[72,128]{1,0:T(1,128)}', space=vmem, size = 0x9000, scoped, tag = 'internal scratch']
  #allocation2 [shape = 'f32[1,1]{1,0:T(1,128)S(1)}', space=vmem, size = 0x200, scoped, tag = 'scoped memory for net_forward.1']
  #allocation3 [shape = 'f32[1,1]{1,0:T(1,128)S(1)}', space=vmem, size = 0x200, scoped, tag = 'scoped memory for net_forward.1']
  %s0 = inlined_call_operand.hbm [shape: f32[8,8], index: 0, kind: input, shape index: {}]
  %s1 = inlined_call_operand.hbm [shape: s32[2,16], index: 1, kind: input, shape index: {}]
  %s2 = inlined_call_operand.hbm [shape: f32[6,16,16], index: 2, kind: input, shape index: {}]
  %s3 = inlined_call_operand.hbm [shape: f32[3,16,16], index: 3, kind: input, shape index: {}]
  %s4 = inlined_call_operand.hbm [shape: f32[3,1,16], index: 4, kind: input, shape index: {}]
  %s5 = inlined_call_operand.hbm [shape: f32[3,1,16], index: 5, kind: input, shape index: {}]
  %s6 = inlined_call_operand.hbm [shape: f32[3,8,4], index: 6, kind: input, shape index: {}]
  %s7 = inlined_call_operand.hbm [shape: f32[8,1], index: 7, kind: input, shape index: {}]
  %s8 = inlined_call_operand.hbm [shape: f32[1,4,8], index: 8, kind: input, shape index: {}]
  %s9 = inlined_call_operand.hbm [shape: f32[4,1], index: 9, kind: input, shape index: {}]
  %s10 = inlined_call_operand.hbm [shape: f32[84,44], index: 10, kind: input, shape index: {}]
  %s11 = inlined_call_operand.hbm [shape: f32[43,20], index: 11, kind: input, shape index: {}]
  %s12 = inlined_call_operand.vmem [shape: f32[4,6], index: 12, kind: input, shape index: {}]
  %s13 = inlined_call_operand.<no memory space> [shape: f32[1,1], index: 13, kind: input, shape index: {}]
  %s14 = inlined_call_operand.vmem [shape: f32[4,4], index: 14, kind: input, shape index: {}]
  %s15 = inlined_call_operand.<no memory space> [shape: f32[1,1], index: 15, kind: input, shape index: {}]
  %s16 = inlined_call_operand.vmem [shape: f32[2,1], index: 16, kind: output, shape index: {}]
  %s17 = sld [smem:[#allocation0]]
  $region122: #{net_forward.1} parent=0
    _
  %s19 = ssub.s32 1, %s17
  %s20 = scalar_select 0, %s19, %s17
  %v21 = vstv %s13
  %22 = vst [vmem:[#allocation2] sm:$0x1] %v21
  %v23 = vstv %s15
  %24 = vst [vmem:[#allocation3] sm:$0x1] %v23
  $region1: #{net_forward.1} parent=0
    #allocation4 [shape = 'u8[4096]{0}', space=vmem, size = 0x1000, scoped, tag = 'input window, operand 0, single buffered']
    #allocation5 [shape = 's32[1]{0}', space=sflag, size = 0x4, scoped, tag = 'scoped memory for net_forward.1']
    #allocation6 [shape = 'u8[1024]{0}', space=vmem, size = 0x400, scoped, tag = 'input window, operand 1, single buffered']
    #allocation7 [shape = 's32[1]{0}', space=sflag, size = 0x4, scoped, tag = 'scoped memory for net_forward.1']
    #allocation8 [shape = 'u8[49152]{0}', space=vmem, size = 0xc000, scoped, tag = 'input window, operand 2, single buffered']
    #allocation9 [shape = 'u8[24576]{0}', space=vmem, size = 0x6000, scoped, tag = 'input window, operand 3, single buffered']
    #allocation10 [shape = 's32[1]{0}', space=sflag, size = 0x4, scoped, tag = 'scoped memory for net_forward.1']
    #allocation11 [shape = 'u8[1536]{0}', space=vmem, size = 0x800, scoped, tag = 'input window, operand 4, single buffered']
    #allocation12 [shape = 'u8[1536]{0}', space=vmem, size = 0x800, scoped, tag = 'input window, operand 5, single buffered']
    #allocation13 [shape = 's32[1]{0}', space=sflag, size = 0x4, scoped, tag = 'scoped memory for net_forward.1']
    #allocation14 [shape = 'u8[12288]{0}', space=vmem, size = 0x3000, scoped, tag = 'input window, operand 6, single buffered']
    #allocation15 [shape = 'u8[4096]{0}', space=vmem, size = 0x1000, scoped, tag = 'input window, operand 7, single buffered']
    #allocation16 [shape = 's32[1]{0}', space=sflag, size = 0x4, scoped, tag = 'scoped memory for net_forward.1']
    #allocation17 [shape = 'u8[2048]{0}', space=vmem, size = 0x800, scoped, tag = 'input window, operand 8, single buffered']
    #allocation18 [shape = 'u8[2048]{0}', space=vmem, size = 0x800, scoped, tag = 'input window, operand 9, single buffered']
    #allocation19 [shape = 's32[1]{0}', space=sflag, size = 0x4, scoped, tag = 'scoped memory for net_forward.1']
    #allocation20 [shape = 'u8[45056]{0}', space=vmem, size = 0xb000, scoped, tag = 'input window, operand 10, single buffered']
    #allocation21 [shape = 'u8[24576]{0}', space=vmem, size = 0x6000, scoped, tag = 'input window, operand 11, single buffered']
    #allocation22 [shape = 's32[1]{0}', space=sflag, size = 0x4, scoped, tag = 'scoped memory for net_forward.1']
    %25 = vsyncpa [#allocation5], 0
    %26 = vsyncpa [#allocation7], 0
    %27 = vsyncpa [#allocation10], 0
    %28 = vsyncpa [#allocation13], 0
    %29 = vsyncpa [#allocation16], 0
    %30 = vsyncpa [#allocation19], 0
    %31 = vsyncpa [#allocation22], 0
    // Predicated region
    $region2: #{net_forward.1} parent=1 // pred_check
      _
    $region3: #{net_forward.1} parent=1 // pred_check_branch
      %33 = sbr.rel (0) target = $region5
    $region4: #{net_forward.1} parent=1 // pred_region
      %35 = vsyncadd [#allocation5], 0
      %s37 = sshll.u32 %s0, 4
      %s38 = int_to_ptr.hbm [resolvable:$true] %s37
      %s39 = sshll.u32 [#allocation4], 4
      %s40 = int_to_ptr.vmem [resolvable:$true] %s39
      %42 = dma.hbm_to_vmem [thread:$0]  %s38, 128, %s40, [#allocation5]
    $region5: #{net_forward.1} parent=1 // pred_fallthru
      _
    // Predicated region
    $region6: #{net_forward.1} parent=1 // pred_check
      _
    $region7: #{net_forward.1} parent=1 // pred_check_branch
      %44 = sbr.rel (0) target = $region9
    $region8: #{net_forward.1} parent=1 // pred_region
      %46 = vsyncadd [#allocation7], 0
      %s48 = sshll.u32 %s1, 4
      %s49 = int_to_ptr.hbm [resolvable:$true] %s48
      %s50 = sshll.u32 [#allocation6], 4
      %s51 = int_to_ptr.vmem [resolvable:$true] %s50
      %53 = dma.hbm_to_vmem [thread:$0]  %s49, 32, %s51, [#allocation7]
    $region9: #{net_forward.1} parent=1 // pred_fallthru
      _
    // Predicated region
    $region10: #{net_forward.1} parent=1 // pred_check
      _
    $region11: #{net_forward.1} parent=1 // pred_check_branch
      %55 = sbr.rel (0) target = $region13
    $region12: #{net_forward.1} parent=1 // pred_region
      %57 = vsyncadd [#allocation7], 0
      %s58 = sshll.u32 %s2, 4
      %s59 = int_to_ptr.hbm [resolvable:$true] %s58
      %s60 = sshll.u32 [#allocation8], 4
      %s61 = int_to_ptr.vmem [resolvable:$true] %s60
      %66 = dma.hbm_to_vmem [thread:$0]  %s59, 1536, %s61, [#allocation7], 128, 128, 8
    $region13: #{net_forward.1} parent=1 // pred_fallthru
      _
    // Predicated region
    $region14: #{net_forward.1} parent=1 // pred_check
      _
    $region15: #{net_forward.1} parent=1 // pred_check_branch
      %68 = sbr.rel (0) target = $region17
    $region16: #{net_forward.1} parent=1 // pred_region
      %70 = vsyncadd [#allocation10], 0
      %s71 = sshll.u32 %s3, 4
      %s72 = int_to_ptr.hbm [resolvable:$true] %s71
      %s73 = sshll.u32 [#allocation9], 4
      %s74 = int_to_ptr.vmem [resolvable:$true] %s73
      %79 = dma.hbm_to_vmem [thread:$0]  %s72, 768, %s74, [#allocation10], 128, 128, 8
    $region17: #{net_forward.1} parent=1 // pred_fallthru
      _
    // Predicated region
    $region18: #{net_forward.1} parent=1 // pred_check
      _
    $region19: #{net_forward.1} parent=1 // pred_check_branch
      %81 = sbr.rel (0) target = $region21
    $region20: #{net_forward.1} parent=1 // pred_region
      %83 = vsyncadd [#allocation10], 0
      %s84 = sshll.u32 %s4, 4
      %s85 = int_to_ptr.hbm [resolvable:$true] %s84
      %s86 = sshll.u32 [#allocation11], 4
      %s87 = int_to_ptr.vmem [resolvable:$true] %s86
      %92 = dma.hbm_to_vmem [thread:$0]  %s85, 48, %s87, [#allocation10], 16, 16, 1
    $region21: #{net_forward.1} parent=1 // pred_fallthru
      _
    // Predicated region
    $region22: #{net_forward.1} parent=1 // pred_check
      _
    $region23: #{net_forward.1} parent=1 // pred_check_branch
      %94 = sbr.rel (0) target = $region25
    $region24: #{net_forward.1} parent=1 // pred_region
      %96 = vsyncadd [#allocation13], 0
      %s97 = sshll.u32 %s5, 4
      %s98 = int_to_ptr.hbm [resolvable:$true] %s97
      %s99 = sshll.u32 [#allocation12], 4
      %s100 = int_to_ptr.vmem [resolvable:$true] %s99
      %105 = dma.hbm_to_vmem [thread:$0]  %s98, 48, %s100, [#allocation13], 16, 16, 1
    $region25: #{net_forward.1} parent=1 // pred_fallthru
      _
    // Predicated region
    $region26: #{net_forward.1} parent=1 // pred_check
      _
    $region27: #{net_forward.1} parent=1 // pred_check_branch
      %107 = sbr.rel (0) target = $region29
    $region28: #{net_forward.1} parent=1 // pred_region
      %109 = vsyncadd [#allocation13], 0
      %s110 = sshll.u32 %s6, 4
      %s111 = int_to_ptr.hbm [resolvable:$true] %s110
      %s112 = sshll.u32 [#allocation14], 4
      %s113 = int_to_ptr.vmem [resolvable:$true] %s112
      %118 = dma.hbm_to_vmem [thread:$0]  %s111, 384, %s113, [#allocation13], 128, 128, 8
    $region29: #{net_forward.1} parent=1 // pred_fallthru
      _
    // Predicated region
    $region30: #{net_forward.1} parent=1 // pred_check
      _
    $region31: #{net_forward.1} parent=1 // pred_check_branch
      %120 = sbr.rel (0) target = $region33
    $region32: #{net_forward.1} parent=1 // pred_region
      %122 = vsyncadd [#allocation16], 0
      %s124 = sshll.u32 %s7, 4
      %s125 = int_to_ptr.hbm [resolvable:$true] %s124
      %s126 = sshll.u32 [#allocation15], 4
      %s127 = int_to_ptr.vmem [resolvable:$true] %s126
      %129 = dma.hbm_to_vmem [thread:$0]  %s125, 128, %s127, [#allocation16]
    $region33: #{net_forward.1} parent=1 // pred_fallthru
      _
    // Predicated region
    $region34: #{net_forward.1} parent=1 // pred_check
      _
    $region35: #{net_forward.1} parent=1 // pred_check_branch
      %131 = sbr.rel (0) target = $region37
    $region36: #{net_forward.1} parent=1 // pred_region
      %133 = vsyncadd [#allocation16], 0
      %s135 = sshll.u32 %s8, 4
      %s136 = int_to_ptr.hbm [resolvable:$true] %s135
      %s137 = sshll.u32 [#allocation17], 4
      %s138 = int_to_ptr.vmem [resolvable:$true] %s137
      %140 = dma.hbm_to_vmem [thread:$0]  %s136, 64, %s138, [#allocation16]
    $region37: #{net_forward.1} parent=1 // pred_fallthru
      _
    // Predicated region
    $region38: #{net_forward.1} parent=1 // pred_check
      _
    $region39: #{net_forward.1} parent=1 // pred_check_branch
      %142 = sbr.rel (0) target = $region41
    $region40: #{net_forward.1} parent=1 // pred_region
      %144 = vsyncadd [#allocation19], 0
      %s146 = sshll.u32 %s9, 4
      %s147 = int_to_ptr.hbm [resolvable:$true] %s146
      %s148 = sshll.u32 [#allocation18], 4
      %s149 = int_to_ptr.vmem [resolvable:$true] %s148
      %151 = dma.hbm_to_vmem [thread:$0]  %s147, 64, %s149, [#allocation19]
    $region41: #{net_forward.1} parent=1 // pred_fallthru
      _
    // Predicated region
    $region42: #{net_forward.1} parent=1 // pred_check
      _
    $region43: #{net_forward.1} parent=1 // pred_check_branch
      %153 = sbr.rel (0) target = $region45
    $region44: #{net_forward.1} parent=1 // pred_region
      %155 = vsyncadd [#allocation19], 0
      %s156 = sshll.u32 %s10, 4
      %s157 = int_to_ptr.hbm [resolvable:$true] %s156
      %s158 = sshll.u32 [#allocation20], 4
      %s159 = int_to_ptr.vmem [resolvable:$true] %s158
      %164 = dma.hbm_to_vmem [thread:$0]  %s157, 1408, %s159, [#allocation19], 128, 128, 8
    $region45: #{net_forward.1} parent=1 // pred_fallthru
      _
    // Predicated region
    $region46: #{net_forward.1} parent=1 // pred_check
      _
    $region47: #{net_forward.1} parent=1 // pred_check_branch
      %166 = sbr.rel (0) target = $region49
    $region48: #{net_forward.1} parent=1 // pred_region
      %168 = vsyncadd [#allocation22], 0
      %s169 = sshll.u32 %s11, 4
      %s170 = int_to_ptr.hbm [resolvable:$true] %s169
      %s171 = sshll.u32 [#allocation21], 4
      %s172 = int_to_ptr.vmem [resolvable:$true] %s171
      %177 = dma.hbm_to_vmem [thread:$0]  %s170, 768, %s172, [#allocation22], 128, 128, 8
    $region49: #{net_forward.1} parent=1 // pred_fallthru
      _
    // Predicated region
    $region50: #{net_forward.1} parent=1 // pred_check
      _
    $region51: #{net_forward.1} parent=1 // pred_check_branch
      %179 = sbr.rel (0) target = $region53
    $region52: #{net_forward.1} parent=1 // pred_region
      _
    $region53: #{net_forward.1} parent=1 // pred_fallthru
      _
    // Predicated region
    $region54: #{net_forward.1} parent=1 // pred_check
      _
    $region55: #{net_forward.1} parent=1 // pred_check_branch
      %181 = sbr.rel (0) target = $region57
    $region56: #{net_forward.1} parent=1 // pred_region
      _
    $region57: #{net_forward.1} parent=1 // pred_fallthru
      _
    // Predicated region
    $region58: #{net_forward.1} parent=1 // pred_check
      _
    $region59: #{net_forward.1} parent=1 // pred_check_branch
      %183 = sbr.rel (0) target = $region61
    $region60: #{net_forward.1} parent=1 // pred_region
      _
    $region61: #{net_forward.1} parent=1 // pred_fallthru
      _
    // Predicated region
    $region62: #{net_forward.1} parent=1 // pred_check
      _
    $region63: #{net_forward.1} parent=1 // pred_check_branch
      %185 = sbr.rel (0) target = $region65
    $region64: #{net_forward.1} parent=1 // pred_region
      _
    $region65: #{net_forward.1} parent=1 // pred_fallthru
      _
    // Predicated region
    $region66: #{net_forward.1} parent=1 // pred_check
      _
    $region67: #{net_forward.1} parent=1 // pred_check_branch
      %187 = sbr.rel (0) target = $region69
    $region68: #{net_forward.1} parent=1 // pred_region
      %189 = dma.done [#allocation5], 128
    $region69: #{net_forward.1} parent=1 // pred_fallthru
      _
    // Predicated region
    $region70: #{net_forward.1} parent=1 // pred_check
      _
    $region71: #{net_forward.1} parent=1 // pred_check_branch
      %191 = sbr.rel (0) target = $region73
    $region72: #{net_forward.1} parent=1 // pred_region
      %193 = dma.done [#allocation7], 32
    $region73: #{net_forward.1} parent=1 // pred_fallthru
      _
    // Predicated region
    $region74: #{net_forward.1} parent=1 // pred_check
      _
    $region75: #{net_forward.1} parent=1 // pred_check_branch
      %195 = sbr.rel (0) target = $region77
    $region76: #{net_forward.1} parent=1 // pred_region
      %197 = dma.done [#allocation7], 1536
    $region77: #{net_forward.1} parent=1 // pred_fallthru
      _
    // Predicated region
    $region78: #{net_forward.1} parent=1 // pred_check
      _
    $region79: #{net_forward.1} parent=1 // pred_check_branch
      %199 = sbr.rel (0) target = $region81
    $region80: #{net_forward.1} parent=1 // pred_region
      %201 = dma.done [#allocation10], 768
    $region81: #{net_forward.1} parent=1 // pred_fallthru
      _
    // Predicated region
    $region82: #{net_forward.1} parent=1 // pred_check
      _
    $region83: #{net_forward.1} parent=1 // pred_check_branch
      %203 = sbr.rel (0) target = $region85
    $region84: #{net_forward.1} parent=1 // pred_region
      %205 = dma.done [#allocation10], 48
    $region85: #{net_forward.1} parent=1 // pred_fallthru
      _
    // Predicated region
    $region86: #{net_forward.1} parent=1 // pred_check
      _
    $region87: #{net_forward.1} parent=1 // pred_check_branch
      %207 = sbr.rel (0) target = $region89
    $region88: #{net_forward.1} parent=1 // pred_region
      %209 = dma.done [#allocation13], 48
    $region89: #{net_forward.1} parent=1 // pred_fallthru
      _
    // Predicated region
    $region90: #{net_forward.1} parent=1 // pred_check
      _
    $region91: #{net_forward.1} parent=1 // pred_check_branch
      %211 = sbr.rel (0) target = $region93
    $region92: #{net_forward.1} parent=1 // pred_region
      %213 = dma.done [#allocation13], 384
    $region93: #{net_forward.1} parent=1 // pred_fallthru
      _
    // Predicated region
    $region94: #{net_forward.1} parent=1 // pred_check
      _
    $region95: #{net_forward.1} parent=1 // pred_check_branch
      %215 = sbr.rel (0) target = $region97
    $region96: #{net_forward.1} parent=1 // pred_region
      %217 = dma.done [#allocation16], 128
    $region97: #{net_forward.1} parent=1 // pred_fallthru
      _
    // Predicated region
    $region98: #{net_forward.1} parent=1 // pred_check
      _
    $region99: #{net_forward.1} parent=1 // pred_check_branch
      %219 = sbr.rel (0) target = $region101
    $region100: #{net_forward.1} parent=1 // pred_region
      %221 = dma.done [#allocation16], 64
    $region101: #{net_forward.1} parent=1 // pred_fallthru
      _
    // Predicated region
    $region102: #{net_forward.1} parent=1 // pred_check
      _
    $region103: #{net_forward.1} parent=1 // pred_check_branch
      %223 = sbr.rel (0) target = $region105
    $region104: #{net_forward.1} parent=1 // pred_region
      %225 = dma.done [#allocation19], 64
    $region105: #{net_forward.1} parent=1 // pred_fallthru
      _
    // Predicated region
    $region106: #{net_forward.1} parent=1 // pred_check
      _
    $region107: #{net_forward.1} parent=1 // pred_check_branch
      %227 = sbr.rel (0) target = $region109
    $region108: #{net_forward.1} parent=1 // pred_region
      %229 = dma.done [#allocation19], 1408
    $region109: #{net_forward.1} parent=1 // pred_fallthru
      _
    // Predicated region
    $region110: #{net_forward.1} parent=1 // pred_check
      _
    $region111: #{net_forward.1} parent=1 // pred_check_branch
      %231 = sbr.rel (0) target = $region113
    $region112: #{net_forward.1} parent=1 // pred_region
      %233 = dma.done [#allocation22], 768
    $region113: #{net_forward.1} parent=1 // pred_fallthru
      _
    %v234 = vld [vmem:[#allocation4] sm:$0xff]
    %vm235 = vcmask 64512
    %v236 = vsel %vm235, %v234, 0.0
    %v237 = vlaneseq
    %v238 = vshrl.u32 %v237, 7
    %v239 = vld [vmem:[#allocation6] sm:$0x1]
    %v240 = vperm.slane %v239, 0
    %vm241 = vcmp.eq.s32.totalorder %v238, %v240
    %v242 = vsel %vm241, 1, 0
    %v243 = vcvt.s32.f32 %v242
    %v244 = vld [vmem:[#allocation6 + $0x1] sm:$0x1]
    %v245 = vperm.slane %v244, 0
    %vm246 = vcmp.eq.s32.totalorder %v238, %v245
    %v247 = vsel %vm246, 1, 0
    %v248 = vcvt.s32.f32 %v247
    %vm249 = vcmask 130048
    %v251 = vsel %vm249, %v248, 0
    %v254 = vsel %vm249, %v243, 0
    %256 = vmatpush.xpose.msra.mxu0 0.0
    %257 = vmatpush.xpose.msra.mxu0 0.0
    %258 = vmatpush.xpose.msra.mxu0 0.0
    %259 = vmatpush.xpose.msra.mxu0 0.0
    %260 = vmatpush.xpose.msra.mxu0 0.0
    %261 = vmatpush.xpose.msra.mxu0 0.0
    %262 = vmatpush.xpose.msra.mxu0 0.0
    %263 = vmatpush.xpose.msra.mxu0 0.0
    %264 = vmatpush.xpose.msra.mxu0 0.0
    %265 = vmatpush.xpose.msra.mxu0 0.0
    %266 = vmatpush.xpose.msra.mxu0 0.0
    %267 = vmatpush.xpose.msra.mxu0 0.0
    %268 = vmatpush.xpose.msra.mxu0 0.0
    %269 = vmatpush.xpose.msra.mxu0 0.0
    %270 = vmatpush.xpose.msra.mxu0 0.0
    %271 = vmatpush.xpose.msra.mxu0 %v254
    %272 = vmatmul.f32.gmra.mxu0 %v251
    %v273 = vpop.f32.mrf.mxu0
    %v274 = vadd.f32 0.0, %v273
    %275 = vdwg.mxu0
    %v276 = vld [vmem:[#allocation9] sm:$0xff]
    %v277 = vld [vmem:[#allocation9 + $0x8] sm:$0xff]
    %s278 = scalar_lea.vmem [#allocation9], 16
    %v279 = vld [vmem:[%s278] sm:$0xff]
    %v280 = vld [vmem:[%s278 + $0x8] sm:$0xff]
    %s281 = scalar_lea.vmem [#allocation9], 32
    %v282 = vld [vmem:[%s281] sm:$0xff]
    %v283 = vld [vmem:[%s281 + $0x8] sm:$0xff]
    %v284 = vld [vmem:[#allocation11] sm:$0x1]
    %s285 = scalar_lea.vmem [#allocation11], 1
    %v286 = vld [vmem:[%s285] sm:$0x1]
    %s287 = scalar_lea.vmem [#allocation11], 2
    %v288 = vld [vmem:[%s287] sm:$0x1]
    %v289 = vld [vmem:[#allocation12] sm:$0x1]
    %s290 = scalar_lea.vmem [#allocation12], 1
    %v291 = vld [vmem:[%s290] sm:$0x1]
    %s292 = scalar_lea.vmem [#allocation12], 2
    %v293 = vld [vmem:[%s292] sm:$0x1]
    %v295 = vsel %vm235, %v274, 0
    %297 = vmatpush.msra.mxu0 0.0
    %298 = vmatpush.msra.mxu0 0.0
    %299 = vmatpush.msra.mxu0 0.0
    %300 = vmatpush.msra.mxu0 0.0
    %301 = vmatpush.msra.mxu0 0.0
    %302 = vmatpush.msra.mxu0 0.0
    %303 = vmatpush.msra.mxu0 0.0
    %304 = vmatpush.msra.mxu0 0.0
    %305 = vmatpush.msra.mxu0 0.0
    %306 = vmatpush.msra.mxu0 0.0
    %307 = vmatpush.msra.mxu0 0.0
    %308 = vmatpush.msra.mxu0 0.0
    %309 = vmatpush.msra.mxu0 0.0
    %310 = vmatpush.msra.mxu0 0.0
    %311 = vmatpush.msra.mxu0 0.0
    %312 = vmatpush.msra.mxu0 %v236
    %313 = vmatmul.f32.gmra.mxu0 %v295
    %v314 = vpop.f32.mrf.mxu0
    %v315 = vadd.f32 0.0, %v314
    %316 = vdwg.mxu0
    %v317 = vld [vmem:[#allocation8] sm:$0xff]
    %v318 = vld [vmem:[#allocation8 + $0x8] sm:$0xff]
    %v320 = vperm.slane %v284, 0
    %v323 = vsel %vm249, %v315, 0
    %325 = vmatpush.msra.mxu0 0.0
    %326 = vmatpush.msra.mxu0 0.0
    %327 = vmatpush.msra.mxu0 0.0
    %328 = vmatpush.msra.mxu0 0.0
    %329 = vmatpush.msra.mxu0 0.0
    %330 = vmatpush.msra.mxu0 0.0
    %331 = vmatpush.msra.mxu0 0.0
    %332 = vmatpush.msra.mxu0 0.0
    %333 = vmatpush.msra.mxu0 0.0
    %334 = vmatpush.msra.mxu0 0.0
    %335 = vmatpush.msra.mxu0 0.0
    %336 = vmatpush.msra.mxu0 0.0
    %337 = vmatpush.msra.mxu0 0.0
    %338 = vmatpush.msra.mxu0 0.0
    %339 = vmatpush.msra.mxu0 %v318
    %340 = vmatpush.msra.mxu0 %v317
    %341 = vmatmul.f32.gmra.mxu0 %v323
    %v342 = vpop.f32.mrf.mxu0
    %v343 = vadd.f32 %v320, %v342
    %344 = vdwg.mxu0
    %s345 = scalar_lea.vmem [#allocation8], 16
    %v346 = vld [vmem:[%s345] sm:$0xff]
    %v347 = vld [vmem:[%s345 + $0x8] sm:$0xff]
    %v349 = vperm.slane %v286, 0
    %351 = vmatpush.msra.mxu0 0.0
    %352 = vmatpush.msra.mxu0 0.0
    %353 = vmatpush.msra.mxu0 0.0
    %354 = vmatpush.msra.mxu0 0.0
    %355 = vmatpush.msra.mxu0 0.0
    %356 = vmatpush.msra.mxu0 0.0
    %357 = vmatpush.msra.mxu0 0.0
    %358 = vmatpush.msra.mxu0 0.0
    %359 = vmatpush.msra.mxu0 0.0
    %360 = vmatpush.msra.mxu0 0.0
    %361 = vmatpush.msra.mxu0 0.0
    %362 = vmatpush.msra.mxu0 0.0
    %363 = vmatpush.msra.mxu0 0.0
    %364 = vmatpush.msra.mxu0 0.0
    %365 = vmatpush.msra.mxu0 %v347
    %366 = vmatpush.msra.mxu0 %v346
    %367 = vmatmul.f32.gmra.mxu0 %v323
    %v368 = vpop.f32.mrf.mxu0
    %v369 = vadd.f32 %v349, %v368
    %370 = vdwg.mxu0
    %s371 = scalar_lea.vmem [#allocation8], 32
    %v372 = vld [vmem:[%s371] sm:$0xff]
    %v373 = vld [vmem:[%s371 + $0x8] sm:$0xff]
    %v375 = vperm.slane %v288, 0
    %377 = vmatpush.msra.mxu0 0.0
    %378 = vmatpush.msra.mxu0 0.0
    %379 = vmatpush.msra.mxu0 0.0
    %380 = vmatpush.msra.mxu0 0.0
    %381 = vmatpush.msra.mxu0 0.0
    %382 = vmatpush.msra.mxu0 0.0
    %383 = vmatpush.msra.mxu0 0.0
    %384 = vmatpush.msra.mxu0 0.0
    %385 = vmatpush.msra.mxu0 0.0
    %386 = vmatpush.msra.mxu0 0.0
    %387 = vmatpush.msra.mxu0 0.0
    %388 = vmatpush.msra.mxu0 0.0
    %389 = vmatpush.msra.mxu0 0.0
    %390 = vmatpush.msra.mxu0 0.0
    %391 = vmatpush.msra.mxu0 %v373
    %392 = vmatpush.msra.mxu0 %v372
    %393 = vmatmul.f32.gmra.mxu0 %v323
    %v394 = vpop.f32.mrf.mxu0
    %v395 = vadd.f32 %v375, %v394
    %396 = vdwg.mxu0
    %v398 = vperm.slane %v289, 0
    %v401 = vsel %vm249, %v236, 0
    %403 = vmatpush.msra.mxu0 0.0
    %404 = vmatpush.msra.mxu0 0.0
    %405 = vmatpush.msra.mxu0 0.0
    %406 = vmatpush.msra.mxu0 0.0
    %407 = vmatpush.msra.mxu0 0.0
    %408 = vmatpush.msra.mxu0 0.0
    %409 = vmatpush.msra.mxu0 0.0
    %410 = vmatpush.msra.mxu0 0.0
    %411 = vmatpush.msra.mxu0 0.0
    %412 = vmatpush.msra.mxu0 0.0
    %413 = vmatpush.msra.mxu0 0.0
    %414 = vmatpush.msra.mxu0 0.0
    %415 = vmatpush.msra.mxu0 0.0
    %416 = vmatpush.msra.mxu0 0.0
    %417 = vmatpush.msra.mxu0 %v277
    %418 = vmatpush.msra.mxu0 %v276
    %419 = vmatmul.f32.gmra.mxu0 %v401
    %v420 = vpop.f32.mrf.mxu0
    %v421 = vadd.f32 %v398, %v420
    %422 = vdwg.mxu0
    %v424 = vperm.slane %v291, 0
    %426 = vmatpush.msra.mxu0 0.0
    %427 = vmatpush.msra.mxu0 0.0
    %428 = vmatpush.msra.mxu0 0.0
    %429 = vmatpush.msra.mxu0 0.0
    %430 = vmatpush.msra.mxu0 0.0
    %431 = vmatpush.msra.mxu0 0.0
    %432 = vmatpush.msra.mxu0 0.0
    %433 = vmatpush.msra.mxu0 0.0
    %434 = vmatpush.msra.mxu0 0.0
    %435 = vmatpush.msra.mxu0 0.0
    %436 = vmatpush.msra.mxu0 0.0
    %437 = vmatpush.msra.mxu0 0.0
    %438 = vmatpush.msra.mxu0 0.0
    %439 = vmatpush.msra.mxu0 0.0
    %440 = vmatpush.msra.mxu0 %v280
    %441 = vmatpush.msra.mxu0 %v279
    %442 = vmatmul.f32.gmra.mxu0 %v401
    %v443 = vpop.f32.mrf.mxu0
    %v444 = vadd.f32 %v424, %v443
    %445 = vdwg.mxu0
    %v447 = vperm.slane %v293, 0
    %449 = vmatpush.msra.mxu0 0.0
    %450 = vmatpush.msra.mxu0 0.0
    %451 = vmatpush.msra.mxu0 0.0
    %452 = vmatpush.msra.mxu0 0.0
    %453 = vmatpush.msra.mxu0 0.0
    %454 = vmatpush.msra.mxu0 0.0
    %455 = vmatpush.msra.mxu0 0.0
    %456 = vmatpush.msra.mxu0 0.0
    %457 = vmatpush.msra.mxu0 0.0
    %458 = vmatpush.msra.mxu0 0.0
    %459 = vmatpush.msra.mxu0 0.0
    %460 = vmatpush.msra.mxu0 0.0
    %461 = vmatpush.msra.mxu0 0.0
    %462 = vmatpush.msra.mxu0 0.0
    %463 = vmatpush.msra.mxu0 %v283
    %464 = vmatpush.msra.mxu0 %v282
    %465 = vmatmul.f32.gmra.mxu0 %v401
    %v466 = vpop.f32.mrf.mxu0
    %v467 = vadd.f32 %v447, %v466
    %468 = vdwg.mxu0
    %v469 = vadd.f32 %v343, %v421
    %v470 = vxor.u32 %v469, 2147483648
    %v471 = vmul.f32 %v470, 1.442695
    %v472 = vpow.pop %v471
    %v473 = vadd.f32 %v472, 1.0
    %v474 = vrcp.pop %v473
    %v475 = vmul.f32 %v473, %v474
    %v476 = vsub.f32 1.0, %v475
    %v477 = vmul.f32 %v474, %v476
    %v478 = vadd.f32 %v474, %v477
    %vm479 = vweird.f32 %v473
    %vm480 = vweird.f32 %v474
    %vm481 = vmor %vm479, %vm480
    %v482 = vsel %vm481, %v474, %v478
    %v483 = vand.u32 2147483647, %v473
    %vm484 = vcmp.eq.f32.partialorder %v483, 8.507059e+37
    %v485 = vand.u32 %v473, 2147483648
    %v486 = vor.u32 1.1754944e-38, %v485
    %v487 = vsel %vm484, %v486, %v482
    %v488 = vmul.f32 1.0, %v487
    %v489 = vadd.f32 %v369, %v444
    %v490 = vxor.u32 %v489, 2147483648
    %v491 = vmul.f32 %v490, 1.442695
    %v492 = vpow.pop %v491
    %v493 = vadd.f32 %v492, 1.0
    %v494 = vrcp.pop %v493
    %v495 = vmul.f32 %v493, %v494
    %v496 = vsub.f32 1.0, %v495
    %v497 = vmul.f32 %v494, %v496
    %v498 = vadd.f32 %v494, %v497
    %vm499 = vweird.f32 %v493
    %vm500 = vweird.f32 %v494
    %vm501 = vmor %vm499, %vm500
    %v502 = vsel %vm501, %v494, %v498
    %v503 = vand.u32 2147483647, %v493
    %vm504 = vcmp.eq.f32.partialorder %v503, 8.507059e+37
    %v505 = vand.u32 %v493, 2147483648
    %v506 = vor.u32 1.1754944e-38, %v505
    %v507 = vsel %vm504, %v506, %v502
    %v508 = vmul.f32 1.0, %v507
    %v509 = vmul.f32 %v488, %v467
    %v510 = vadd.f32 %v395, %v509
    %v511 = vtanh.pop %v510
    %v512 = vsub.f32 1.0, %v508
    %v513 = vmul.f32 %v512, %v511
    %v514 = vmul.f32 %v508, %v236
    %v515 = vadd.f32 %v513, %v514
    %516 = vmatpush.msra.mxu0 0.0
    %517 = vmatpush.msra.mxu0 0.0
    %518 = vmatpush.msra.mxu0 0.0
    %519 = vmatpush.msra.mxu0 0.0
    %520 = vmatpush.msra.mxu0 0.0
    %521 = vmatpush.msra.mxu0 0.0
    %522 = vmatpush.msra.mxu0 0.0
    %523 = vmatpush.msra.mxu0 0.0
    %524 = vmatpush.msra.mxu0 0.0
    %525 = vmatpush.msra.mxu0 0.0
    %526 = vmatpush.msra.mxu0 0.0
    %527 = vmatpush.msra.mxu0 0.0
    %528 = vmatpush.msra.mxu0 0.0
    %529 = vmatpush.msra.mxu0 0.0
    %530 = vmatpush.msra.mxu0 0.0
    %531 = vmatpush.msra.mxu0 %v515
    %532 = vmatmul.f32.gmra.mxu0 %v295
    %v533 = vpop.f32.mrf.mxu0
    %v534 = vadd.f32 0.0, %v533
    %535 = vdwg.mxu0
    %s536 = scalar_lea.vmem [#allocation8], 48
    %v537 = vld [vmem:[%s536] sm:$0xff]
    %v538 = vld [vmem:[%s536 + $0x8] sm:$0xff]
    %v540 = vsel %vm249, %v534, 0
    %542 = vmatpush.msra.mxu0 0.0
    %543 = vmatpush.msra.mxu0 0.0
    %544 = vmatpush.msra.mxu0 0.0
    %545 = vmatpush.msra.mxu0 0.0
    %546 = vmatpush.msra.mxu0 0.0
    %547 = vmatpush.msra.mxu0 0.0
    %548 = vmatpush.msra.mxu0 0.0
    %549 = vmatpush.msra.mxu0 0.0
    %550 = vmatpush.msra.mxu0 0.0
    %551 = vmatpush.msra.mxu0 0.0
    %552 = vmatpush.msra.mxu0 0.0
    %553 = vmatpush.msra.mxu0 0.0
    %554 = vmatpush.msra.mxu0 0.0
    %555 = vmatpush.msra.mxu0 0.0
    %556 = vmatpush.msra.mxu0 %v538
    %557 = vmatpush.msra.mxu0 %v537
    %558 = vmatmul.f32.gmra.mxu0 %v540
    %v559 = vpop.f32.mrf.mxu0
    %v560 = vadd.f32 %v320, %v559
    %561 = vdwg.mxu0
    %s562 = scalar_lea.vmem [#allocation8], 64
    %v563 = vld [vmem:[%s562] sm:$0xff]
    %v564 = vld [vmem:[%s562 + $0x8] sm:$0xff]
    %565 = vmatpush.msra.mxu0 0.0
    %566 = vmatpush.msra.mxu0 0.0
    %567 = vmatpush.msra.mxu0 0.0
    %568 = vmatpush.msra.mxu0 0.0
    %569 = vmatpush.msra.mxu0 0.0
    %570 = vmatpush.msra.mxu0 0.0
    %571 = vmatpush.msra.mxu0 0.0
    %572 = vmatpush.msra.mxu0 0.0
    %573 = vmatpush.msra.mxu0 0.0
    %574 = vmatpush.msra.mxu0 0.0
    %575 = vmatpush.msra.mxu0 0.0
    %576 = vmatpush.msra.mxu0 0.0
    %577 = vmatpush.msra.mxu0 0.0
    %578 = vmatpush.msra.mxu0 0.0
    %579 = vmatpush.msra.mxu0 %v564
    %580 = vmatpush.msra.mxu0 %v563
    %581 = vmatmul.f32.gmra.mxu0 %v540
    %v582 = vpop.f32.mrf.mxu0
    %v583 = vadd.f32 %v349, %v582
    %584 = vdwg.mxu0
    %s585 = scalar_lea.vmem [#allocation8], 80
    %v586 = vld [vmem:[%s585] sm:$0xff]
    %v587 = vld [vmem:[%s585 + $0x8] sm:$0xff]
    %588 = vmatpush.msra.mxu0 0.0
    %589 = vmatpush.msra.mxu0 0.0
    %590 = vmatpush.msra.mxu0 0.0
    %591 = vmatpush.msra.mxu0 0.0
    %592 = vmatpush.msra.mxu0 0.0
    %593 = vmatpush.msra.mxu0 0.0
    %594 = vmatpush.msra.mxu0 0.0
    %595 = vmatpush.msra.mxu0 0.0
    %596 = vmatpush.msra.mxu0 0.0
    %597 = vmatpush.msra.mxu0 0.0
    %598 = vmatpush.msra.mxu0 0.0
    %599 = vmatpush.msra.mxu0 0.0
    %600 = vmatpush.msra.mxu0 0.0
    %601 = vmatpush.msra.mxu0 0.0
    %602 = vmatpush.msra.mxu0 %v587
    %603 = vmatpush.msra.mxu0 %v586
    %604 = vmatmul.f32.gmra.mxu0 %v540
    %v605 = vpop.f32.mrf.mxu0
    %v606 = vadd.f32 %v375, %v605
    %607 = vdwg.mxu0
    %v609 = vsel %vm249, %v515, 0
    %611 = vmatpush.msra.mxu0 0.0
    %612 = vmatpush.msra.mxu0 0.0
    %613 = vmatpush.msra.mxu0 0.0
    %614 = vmatpush.msra.mxu0 0.0
    %615 = vmatpush.msra.mxu0 0.0
    %616 = vmatpush.msra.mxu0 0.0
    %617 = vmatpush.msra.mxu0 0.0
    %618 = vmatpush.msra.mxu0 0.0
    %619 = vmatpush.msra.mxu0 0.0
    %620 = vmatpush.msra.mxu0 0.0
    %621 = vmatpush.msra.mxu0 0.0
    %622 = vmatpush.msra.mxu0 0.0
    %623 = vmatpush.msra.mxu0 0.0
    %624 = vmatpush.msra.mxu0 0.0
    %625 = vmatpush.msra.mxu0 %v277
    %626 = vmatpush.msra.mxu0 %v276
    %627 = vmatmul.f32.gmra.mxu0 %v609
    %v628 = vpop.f32.mrf.mxu0
    %v629 = vadd.f32 %v398, %v628
    %630 = vdwg.mxu0
    %631 = vmatpush.msra.mxu0 0.0
    %632 = vmatpush.msra.mxu0 0.0
    %633 = vmatpush.msra.mxu0 0.0
    %634 = vmatpush.msra.mxu0 0.0
    %635 = vmatpush.msra.mxu0 0.0
    %636 = vmatpush.msra.mxu0 0.0
    %637 = vmatpush.msra.mxu0 0.0
    %638 = vmatpush.msra.mxu0 0.0
    %639 = vmatpush.msra.mxu0 0.0
    %640 = vmatpush.msra.mxu0 0.0
    %641 = vmatpush.msra.mxu0 0.0
    %642 = vmatpush.msra.mxu0 0.0
    %643 = vmatpush.msra.mxu0 0.0
    %644 = vmatpush.msra.mxu0 0.0
    %645 = vmatpush.msra.mxu0 %v280
    %646 = vmatpush.msra.mxu0 %v279
    %647 = vmatmul.f32.gmra.mxu0 %v609
    %v648 = vpop.f32.mrf.mxu0
    %v649 = vadd.f32 %v424, %v648
    %650 = vdwg.mxu0
    %651 = vmatpush.msra.mxu0 0.0
    %652 = vmatpush.msra.mxu0 0.0
    %653 = vmatpush.msra.mxu0 0.0
    %654 = vmatpush.msra.mxu0 0.0
    %655 = vmatpush.msra.mxu0 0.0
    %656 = vmatpush.msra.mxu0 0.0
    %657 = vmatpush.msra.mxu0 0.0
    %658 = vmatpush.msra.mxu0 0.0
    %659 = vmatpush.msra.mxu0 0.0
    %660 = vmatpush.msra.mxu0 0.0
    %661 = vmatpush.msra.mxu0 0.0
    %662 = vmatpush.msra.mxu0 0.0
    %663 = vmatpush.msra.mxu0 0.0
    %664 = vmatpush.msra.mxu0 0.0
    %665 = vmatpush.msra.mxu0 %v283
    %666 = vmatpush.msra.mxu0 %v282
    %667 = vmatmul.f32.gmra.mxu0 %v609
    %v668 = vpop.f32.mrf.mxu0
    %v669 = vadd.f32 %v447, %v668
    %670 = vdwg.mxu0
    %v671 = vadd.f32 %v560, %v629
    %v672 = vxor.u32 %v671, 2147483648
    %v673 = vmul.f32 %v672, 1.442695
    %v674 = vpow.pop %v673
    %v675 = vadd.f32 %v674, 1.0
    %v676 = vrcp.pop %v675
    %v677 = vmul.f32 %v675, %v676
    %v678 = vsub.f32 1.0, %v677
    %v679 = vmul.f32 %v676, %v678
    %v680 = vadd.f32 %v676, %v679
    %vm681 = vweird.f32 %v675
    %vm682 = vweird.f32 %v676
    %vm683 = vmor %vm681, %vm682
    %v684 = vsel %vm683, %v676, %v680
    %v685 = vand.u32 2147483647, %v675
    %vm686 = vcmp.eq.f32.partialorder %v685, 8.507059e+37
    %v687 = vand.u32 %v675, 2147483648
    %v688 = vor.u32 1.1754944e-38, %v687
    %v689 = vsel %vm686, %v688, %v684
    %v690 = vmul.f32 1.0, %v689
    %v691 = vadd.f32 %v583, %v649
    %v692 = vxor.u32 %v691, 2147483648
    %v693 = vmul.f32 %v692, 1.442695
    %v694 = vpow.pop %v693
    %v695 = vadd.f32 %v694, 1.0
    %v696 = vrcp.pop %v695
    %v697 = vmul.f32 %v695, %v696
    %v698 = vsub.f32 1.0, %v697
    %v699 = vmul.f32 %v696, %v698
    %v700 = vadd.f32 %v696, %v699
    %vm701 = vweird.f32 %v695
    %vm702 = vweird.f32 %v696
    %vm703 = vmor %vm701, %vm702
    %v704 = vsel %vm703, %v696, %v700
    %v705 = vand.u32 2147483647, %v695
    %vm706 = vcmp.eq.f32.partialorder %v705, 8.507059e+37
    %v707 = vand.u32 %v695, 2147483648
    %v708 = vor.u32 1.1754944e-38, %v707
    %v709 = vsel %vm706, %v708, %v704
    %v710 = vmul.f32 1.0, %v709
    %v711 = vmul.f32 %v690, %v669
    %v712 = vadd.f32 %v606, %v711
    %v713 = vtanh.pop %v712
    %v714 = vsub.f32 1.0, %v710
    %v715 = vmul.f32 %v714, %v713
    %v716 = vmul.f32 %v710, %v515
    %v717 = vadd.f32 %v715, %v716
    %719 = vrot.lane.b32.xlu0 %v717, 1
    %v720 = vpop.permute.xlu0 %719
    %723 = vrot.lane.b32.xlu0 %v234, 17
    %v724 = vpop.permute.xlu0 %723
    %vm726 = vcmask 7168
    %v727 = vsel %vm726, 0.0, %v720
    %vm728 = vcmask 138240
    %v729 = vsel %vm728, %v727, %v724
    %vm730 = vcmask 203776
    %v731 = vsel %vm730, %v729, 0.0
    %v732 = vrot.slane %v717, 4
    %733 = vrot.lane.b32.xlu0 %v732, 1
    %v734 = vpop.permute.xlu0 %733
    %v736 = vrot.slane %v234, 4
    %737 = vrot.lane.b32.xlu0 %v736, 17
    %v738 = vpop.permute.xlu0 %737
    %v740 = vsel %vm726, 0.0, %v734
    %v741 = vsel %vm728, %v740, %v738
    %v742 = vsel %vm730, %v741, 0.0
    %v743 = vsel %vm728, %v727, 0.0
    %v744 = vsel %vm728, %v740, 0.0
    %746 = vrot.lane.b32.xlu0 %v742, 26
    %v747 = vpop.permute.xlu0 %746
    %750 = vrot.lane.b32.xlu0 %v743, 52
    %v751 = vpop.permute.xlu0 %750
    %754 = vrot.lane.b32.xlu0 %v744, 70
    %v755 = vpop.permute.xlu0 %754
    %vm757 = vcmask 211968
    %v758 = vsel %vm757, %v731, %v747
    %vm759 = vcmask 424960
    %v760 = vsel %vm759, %v758, %v751
    %vm761 = vcmask 572416
    %v762 = vsel %vm761, %v760, %v755
    %v763 = vld [vmem:[#allocation14] sm:$0xff]
    %s764 = scalar_lea.vmem [#allocation14], 8
    %v765 = vld [vmem:[%s764] sm:$0xff]
    %767 = vrot.lane.b32.xlu0 %v762, 127
    %v768 = vpop.permute.xlu0 %767
    %vm769 = vcmask 31744
    %v771 = vsel %vm769, %v765, 0
    %vm773 = vcmask 1043456
    %v774 = vsel %vm773, %v768, 0
    %776 = vmatpush.msra.mxu0 0.0
    %777 = vmatpush.msra.mxu0 0.0
    %778 = vmatpush.msra.mxu0 0.0
    %779 = vmatpush.msra.mxu0 0.0
    %780 = vmatpush.msra.mxu0 0.0
    %781 = vmatpush.msra.mxu0 0.0
    %782 = vmatpush.msra.mxu0 0.0
    %783 = vmatpush.msra.mxu0 0.0
    %784 = vmatpush.msra.mxu0 0.0
    %785 = vmatpush.msra.mxu0 0.0
    %786 = vmatpush.msra.mxu0 0.0
    %787 = vmatpush.msra.mxu0 0.0
    %788 = vmatpush.msra.mxu0 0.0
    %789 = vmatpush.msra.mxu0 0.0
    %790 = vmatpush.msra.mxu0 0.0
    %791 = vmatpush.msra.mxu0 %v774
    %792 = vmatmul.f32.gmra.mxu0 %v771
    %v793 = vpop.f32.mrf.mxu0
    %v794 = vadd.f32 0.0, %v793
    %795 = vdwg.mxu0
    %v797 = vsel %vm769, %v763, 0
    %v799 = vsel %vm773, %v762, 0
    %801 = vmatpush.msra.mxu0 0.0
    %802 = vmatpush.msra.mxu0 0.0
    %803 = vmatpush.msra.mxu0 0.0
    %804 = vmatpush.msra.mxu0 0.0
    %805 = vmatpush.msra.mxu0 0.0
    %806 = vmatpush.msra.mxu0 0.0
    %807 = vmatpush.msra.mxu0 0.0
    %808 = vmatpush.msra.mxu0 0.0
    %809 = vmatpush.msra.mxu0 0.0
    %810 = vmatpush.msra.mxu0 0.0
    %811 = vmatpush.msra.mxu0 0.0
    %812 = vmatpush.msra.mxu0 0.0
    %813 = vmatpush.msra.mxu0 0.0
    %814 = vmatpush.msra.mxu0 0.0
    %815 = vmatpush.msra.mxu0 0.0
    %816 = vmatpush.msra.mxu0 %v799
    %817 = vmatmul.f32.gmra.mxu0 %v797
    %v818 = vpop.f32.mrf.mxu0
    %v819 = vadd.f32 %v794, %v818
    %820 = vdwg.mxu0
    %s821 = scalar_lea.vmem [#allocation14], 16
    %v822 = vld [vmem:[%s821] sm:$0xff]
    %823 = vrot.lane.b32.xlu0 %v762, 126
    %v824 = vpop.permute.xlu0 %823
    %v826 = vsel %vm769, %v822, 0
    %v828 = vsel %vm773, %v824, 0
    %830 = vmatpush.msra.mxu0 0.0
    %831 = vmatpush.msra.mxu0 0.0
    %832 = vmatpush.msra.mxu0 0.0
    %833 = vmatpush.msra.mxu0 0.0
    %834 = vmatpush.msra.mxu0 0.0
    %835 = vmatpush.msra.mxu0 0.0
    %836 = vmatpush.msra.mxu0 0.0
    %837 = vmatpush.msra.mxu0 0.0
    %838 = vmatpush.msra.mxu0 0.0
    %839 = vmatpush.msra.mxu0 0.0
    %840 = vmatpush.msra.mxu0 0.0
    %841 = vmatpush.msra.mxu0 0.0
    %842 = vmatpush.msra.mxu0 0.0
    %843 = vmatpush.msra.mxu0 0.0
    %844 = vmatpush.msra.mxu0 0.0
    %845 = vmatpush.msra.mxu0 %v828
    %846 = vmatmul.f32.gmra.mxu0 %v826
    %v847 = vpop.f32.mrf.mxu0
    %v848 = vadd.f32 0.0, %v847
    %849 = vdwg.mxu0
    %v850 = vadd.f32 %v819, %v848
    %v851 = vld [vmem:[#allocation15] sm:$0xff]
    %853 = vset.pattern.permute.xlu0 0
    %854 = vperm.xlu0 %853, %v851
    %v855 = vpop.permute.xlu0 %854
    %v857 = vadd.f32 %v850, %v855
    %v858 = vmax.f32 %v857, 0.0
    %860 = vrot.lane.b32.xlu0 %v858, 127
    %v861 = vpop.permute.xlu0 %860
    %v863 = vmax.f32 %v858, %v861
    %864 = vrot.lane.b32.xlu0 %v858, 126
    %v865 = vpop.permute.xlu0 %864
    %v867 = vmax.f32 %v863, %v865
    %v868 = vld [vmem:[#allocation20] sm:$0xff]
    %v869 = vld [vmem:[#allocation20 + $0x8] sm:$0xff]
    %v870 = vld [vmem:[#allocation20 + $0x10] sm:$0xff]
    %v871 = vld [vmem:[#allocation20 + $0x18] sm:$0xff]
    %v872 = vld [vmem:[#allocation20 + $0x20] sm:$0xff]
    %v873 = vld [vmem:[#allocation20 + $0x28] sm:$0xff]
    %v874 = vld [vmem:[#allocation20 + $0x30] sm:$0xff]
    %v875 = vld [vmem:[#allocation20 + $0x38] sm:$0xff]
    %v876 = vld [vmem:[#allocation20 + $0x40] sm:$0xff]
    %v877 = vld [vmem:[#allocation20 + $0x48] sm:$0xff]
    %v878 = vld [vmem:[#allocation20 + $0x50] sm:$0xf]
    %vm879 = vcmask 687104
    %v881 = vsel %vm879, %v867, 0
    %v884 = vsel %vm773, %v878, 0
    %886 = vmatpush.msra.mxu0 0.0
    %887 = vmatpush.msra.mxu0 0.0
    %888 = vmatpush.msra.mxu0 0.0
    %889 = vmatpush.msra.mxu0 0.0
    %890 = vmatpush.msra.mxu0 0.0
    %891 = vmatpush.msra.mxu0 %v884
    %892 = vmatpush.msra.mxu0 %v877
    %893 = vmatpush.msra.mxu0 %v876
    %894 = vmatpush.msra.mxu0 %v875
    %895 = vmatpush.msra.mxu0 %v874
    %896 = vmatpush.msra.mxu0 %v873
    %897 = vmatpush.msra.mxu0 %v872
    %898 = vmatpush.msra.mxu0 %v871
    %899 = vmatpush.msra.mxu0 %v870
    %900 = vmatpush.msra.mxu0 %v869
    %901 = vmatpush.msra.mxu0 %v868
    %902 = vmatmul.f32.gmra.mxu0 %v881
    %v903 = vpop.f32.mrf.mxu0
    %v904 = vadd.f32 0.0, %v903
    %905 = vdwg.mxu0
    %v906 = vld [vmem:[#allocation17] sm:$0xf]
    %v907 = vld [vmem:[#allocation18] sm:$0xf]
    %909 = vset.pattern.permute.xlu0 0
    %910 = vperm.xlu0 %909, %v907
    %v911 = vpop.permute.xlu0 %910
    %v914 = vsel %vm235, %v906, 0
    %916 = vmatpush.msra.mxu0 0.0
    %917 = vmatpush.msra.mxu0 0.0
    %918 = vmatpush.msra.mxu0 0.0
    %919 = vmatpush.msra.mxu0 0.0
    %920 = vmatpush.msra.mxu0 0.0
    %921 = vmatpush.msra.mxu0 0.0
    %922 = vmatpush.msra.mxu0 0.0
    %923 = vmatpush.msra.mxu0 0.0
    %924 = vmatpush.msra.mxu0 0.0
    %925 = vmatpush.msra.mxu0 0.0
    %926 = vmatpush.msra.mxu0 0.0
    %927 = vmatpush.msra.mxu0 0.0
    %928 = vmatpush.msra.mxu0 0.0
    %929 = vmatpush.msra.mxu0 0.0
    %930 = vmatpush.msra.mxu0 0.0
    %931 = vmatpush.msra.mxu0 %v904
    %932 = vmatmul.f32.gmra.mxu0 %v914
    %v933 = vpop.f32.mrf.mxu0
    %v934 = vadd.f32 %v911, %v933
    %935 = vdwg.mxu0
    %937 = vrot.lane.b32.xlu0 %v934, 127
    %v938 = vpop.permute.xlu0 %937
    %v940 = vmax.f32 %v934, %v938
    %v941 = vld [vmem:[#allocation21] sm:$0xff]
    %v942 = vld [vmem:[#allocation21 + $0x8] sm:$0xff]
    %v943 = vld [vmem:[#allocation21 + $0x10] sm:$0xff]
    %v944 = vld [vmem:[#allocation21 + $0x18] sm:$0xff]
    %v945 = vld [vmem:[#allocation21 + $0x20] sm:$0xff]
    %v946 = vld [vmem:[#allocation21 + $0x28] sm:$0x7]
    %vm947 = vcmask 351232
    %v949 = vsel %vm947, %v940, 0
    %vm951 = vcmask 1042432
    %v953 = vsel %vm951, %v946, 0
    %955 = vmatpush.msra.mxu0 0.0
    %956 = vmatpush.msra.mxu0 0.0
    %957 = vmatpush.msra.mxu0 0.0
    %958 = vmatpush.msra.mxu0 0.0
    %959 = vmatpush.msra.mxu0 0.0
    %960 = vmatpush.msra.mxu0 0.0
    %961 = vmatpush.msra.mxu0 0.0
    %962 = vmatpush.msra.mxu0 0.0
    %963 = vmatpush.msra.mxu0 0.0
    %964 = vmatpush.msra.mxu0 0.0
    %965 = vmatpush.msra.mxu0 %v953
    %966 = vmatpush.msra.mxu0 %v945
    %967 = vmatpush.msra.mxu0 %v944
    %968 = vmatpush.msra.mxu0 %v943
    %969 = vmatpush.msra.mxu0 %v942
    %970 = vmatpush.msra.mxu0 %v941
    %971 = vmatmul.f32.gmra.mxu0 %v949
    %v972 = vpop.f32.mrf.mxu0
    %v973 = vadd.f32 0.0, %v972
    %974 = vdwg.mxu0
    %v975 = vld [vmem:[%s12] sm:$0xf]
    %v976 = vmul.f32 %v973, %v975
    %vm977 = vcmask 44032
    %v978 = vsel %vm977, %v976, 0.0
    %979 = vadd.xlane.f32.xlu0 %v978
    %v980 = vpop.xlane.xlu0 %979
    %v981 = vrot.slane %v980, 4
    %v982 = vadd.f32 %v980, %v981
    %v983 = vrot.slane %v982, 2
    %v984 = vadd.f32 %v982, %v983
    %v985 = vrot.slane %v984, 1
    %v986 = vadd.f32 %v984, %v985
    %s987 = vtos %v986
    %v988 = vstv %s987
    %v989 = vld [vmem:[#allocation2] sm:$0x1]
    %v990 = vadd.f32 %v988, %v989
    %v991 = vld [vmem:[%s14] sm:$0xf]
    %993 = vrot.lane.b32.xlu0 %v991, 12
    %v994 = vpop.permute.xlu0 %993
    %v996 = vmul.f32 %v973, %v994
    %998 = vrot.lane.b32.xlu0 %v996, 116
    %v999 = vpop.permute.xlu0 %998
    %vm1001 = vcmask 27648
    %v1002 = vsel %vm1001, %v999, 0.0
    %1003 = vadd.xlane.f32.xlu0 %v1002
    %v1004 = vpop.xlane.xlu0 %1003
    %v1005 = vrot.slane %v1004, 4
    %v1006 = vadd.f32 %v1004, %v1005
    %v1007 = vrot.slane %v1006, 2
    %v1008 = vadd.f32 %v1006, %v1007
    %v1009 = vrot.slane %v1008, 1
    %v1010 = vadd.f32 %v1008, %v1009
    %s1011 = vtos %v1010
    %v1012 = vstv %s1011
    %v1013 = vld [vmem:[#allocation3] sm:$0x1]
    %v1014 = vadd.f32 %v1012, %v1013
    %v1015 = vmul.f32 %v990, %v1014
    %1017 = vrot.lane.b32.xlu0 %v975, 6
    %v1018 = vpop.permute.xlu0 %1017
    %v1020 = vmul.f32 %v973, %v1018
    %1022 = vrot.lane.b32.xlu0 %v1020, 122
    %v1023 = vpop.permute.xlu0 %1022
    %v1025 = vsel %vm977, %v1023, 0.0
    %1026 = vadd.xlane.f32.xlu0 %v1025
    %v1027 = vpop.xlane.xlu0 %1026
    %v1028 = vrot.slane %v1027, 4
    %v1029 = vadd.f32 %v1027, %v1028
    %v1030 = vrot.slane %v1029, 2
    %v1031 = vadd.f32 %v1029, %v1030
    %v1032 = vrot.slane %v1031, 1
    %v1033 = vadd.f32 %v1031, %v1032
    %s1034 = vtos %v1033
    %v1035 = vstv %s1034
    %v1036 = vadd.f32 %v1035, %v989
    %1037 = vrot.lane.b32.xlu0 %v991, 16
    %v1038 = vpop.permute.xlu0 %1037
    %v1040 = vmul.f32 %v973, %v1038
    %1042 = vrot.lane.b32.xlu0 %v1040, 112
    %v1043 = vpop.permute.xlu0 %1042
    %v1045 = vsel %vm1001, %v1043, 0.0
    %1046 = vadd.xlane.f32.xlu0 %v1045
    %v1047 = vpop.xlane.xlu0 %1046
    %v1048 = vrot.slane %v1047, 4
    %v1049 = vadd.f32 %v1047, %v1048
    %v1050 = vrot.slane %v1049, 2
    %v1051 = vadd.f32 %v1049, %v1050
    %v1052 = vrot.slane %v1051, 1
    %v1053 = vadd.f32 %v1051, %v1052
    %s1054 = vtos %v1053
    %v1055 = vstv %s1054
    %v1056 = vadd.f32 %v1055, %v1013
    %v1057 = vmul.f32 %v1036, %v1056
    %v1059 = vperm.slane %v1057, 0
    %vm1061 = vcmask 1040384
    %v1062 = vsel %vm1061, %v1015, %v1059
    %v1063 = vsub.f32 %v1062, %v1062
    %v1064 = vmul.f32 %v1063, 1.442695
    %v1065 = vpow.pop %v1064
    %v1066 = vadd.f32 %v1065, 0.0
    %v1067 = vrcp.pop %v1066
    %v1068 = vmul.f32 %v1066, %v1067
    %v1069 = vsub.f32 1.0, %v1068
    %v1070 = vmul.f32 %v1067, %v1069
    %v1071 = vadd.f32 %v1067, %v1070
    %vm1072 = vweird.f32 %v1066
    %vm1073 = vweird.f32 %v1067
    %vm1074 = vmor %vm1072, %vm1073
    %v1075 = vsel %vm1074, %v1067, %v1071
    %v1076 = vand.u32 2147483647, %v1066
    %vm1077 = vcmp.eq.f32.partialorder %v1076, 8.507059e+37
    %v1078 = vand.u32 %v1066, 2147483648
    %v1079 = vor.u32 1.1754944e-38, %v1078
    %v1080 = vsel %vm1077, %v1079, %v1075
    %v1081 = vmul.f32 %v1065, %v1080
    %vm1082 = vcmask 1024
    %1083 = vst.msk [vmem:[%s16] sm:$0x3] %vm1082, %v1081
    // Predicated region
    $region114: #{net_forward.1} parent=1 // pred_check
      _
    $region115: #{net_forward.1} parent=1 // pred_check_branch
      %1085 = sbr.rel (0) target = $region117
    $region116: #{net_forward.1} parent=1 // pred_region
      _
    $region117: #{net_forward.1} parent=1 // pred_fallthru
      _
    // Predicated region
    $region118: #{net_forward.1} parent=1 // pred_check
      _
    $region119: #{net_forward.1} parent=1 // pred_check_branch
      %1087 = sbr.rel (0) target = $region121
    $region120: #{net_forward.1} parent=1 // pred_region
      _
    $region121: #{net_forward.1} parent=1 // pred_fallthru
      _
    %1088 = vsyncpa [#allocation5], 1
    %1089 = vsyncpa [#allocation7], 1
    %1090 = vsyncpa [#allocation10], 1
    %1091 = vsyncpa [#allocation13], 1
    %1092 = vsyncpa [#allocation16], 1
    %1093 = vsyncpa [#allocation19], 1
    %1094 = vsyncpa [#allocation22], 1

</llo_original>
